<compile_context>
chip_gen: v7x
topology: tpu7x:2x2x1
jax: 0.10.0
libtpu: 0.0.40
codegen_flags: <defaults>
</compile_context>

<pallas_src>
import functools
import math

import jax
import jax.numpy as jnp
from jax import lax
from jax.experimental import pallas as pl
from jax.experimental.pallas import tpu as pltpu


# ----------------------------- config ---------------------------------------
VOCAB_SIZE = 11
N_EMBED = 32
N_HEAD = 4
N_LAYER = 2
BLOCK_SIZE = 8
BATCH = 2
EPS = 1e-5
VPAD = 128           # lane-dense padded logits width (sliced back to VOCAB_SIZE outside)
VROWS = 16           # padded vocab rows for the one-hot gather matmul


# --------------------------- in-kernel helpers -------------------------------
def _layernorm(x, gamma, beta):
    mu = jnp.mean(x, axis=-1, keepdims=True)
    var = jnp.mean((x - mu) ** 2, axis=-1, keepdims=True)
    return (x - mu) * lax.rsqrt(var + EPS) * gamma + beta


def _gelu(x):
    # exact (erf-based) GELU, matching torch.nn.GELU() default
    return 0.5 * x * (1.0 + lax.erf(x * (1.0 / math.sqrt(2.0))))


# --------------------------- fused GPT kernel --------------------------------
def gpt_kernel(idx_ref, tok_ref, pos_ref, bias_ref,
               wqkv_ref, wproj_ref, w1_ref, w2_ref, lmw_ref, slab_ref,
               o_ref, *, batch, seq, n_head, n_layer):
    C = pos_ref.shape[-1]
    VR = tok_ref.shape[0]
    D = C // n_head
    C4 = 4 * C
    BT = batch * seq

    # ---- token embedding: exact one-hot gather on the MXU (bf16 operands) ----
    ids = idx_ref[...]                                              # (BT, 1) int32
    iota_v = lax.broadcasted_iota(jnp.int32, (BT, VR), 1)
    onehot = (iota_v == ids).astype(jnp.bfloat16)                   # (BT, VR)
    x = jnp.dot(onehot, tok_ref[...],
                preferred_element_type=jnp.float32)                 # (BT, C) f32

    # ---- positional slab precomputed in the wrapper (already batch-tiled) ----
    x = x + pos_ref[...]                                            # (BT, C)

    # ---- precomputed causal + same-sequence additive mask ----
    attn_bias = bias_ref[...]                                       # (BT, BT) f32

    def row(r, w):                                                  # packed small params
        return slab_ref[r:r + 1, 0:w]                               # (1, w) f32

    for l in range(n_layer):
        base = 7 * l

        # -------- x = x + SelfAttention(LN1(x)) --------
        h = _layernorm(x, row(base + 0, C), row(base + 1, C))       # (BT, C) f32
        qkv = jnp.dot(h.astype(jnp.bfloat16), wqkv_ref[l],
                      preferred_element_type=jnp.float32)           # (BT, 3C) - one MXU push
        # split into per-head (H, BT, D); 1/sqrt(D) already folded into the Q weights
        q = jnp.stack([qkv[:, hd * D:(hd + 1) * D]
                       for hd in range(n_head)], axis=0).astype(jnp.bfloat16)
        k = jnp.stack([qkv[:, C + hd * D:C + (hd + 1) * D]
                       for hd in range(n_head)], axis=0).astype(jnp.bfloat16)
        v = jnp.stack([qkv[:, 2 * C + hd * D:2 * C + (hd + 1) * D]
                       for hd in range(n_head)], axis=0).astype(jnp.bfloat16)

        s = jnp.einsum('htd,hsd->hts', q, k,
                       preferred_element_type=jnp.float32)          # (H, BT, BT)
        s = s + attn_bias[None]
        s = s - jnp.max(s, axis=-1, keepdims=True)
        e = jnp.exp(s)
        p = e / jnp.sum(e, axis=-1, keepdims=True)                  # exact softmax (f32)

        o = jnp.einsum('hts,hsd->htd', p.astype(jnp.bfloat16), v,
                       preferred_element_type=jnp.float32)          # (H, BT, D)
        o_cat = jnp.concatenate([o[hd] for hd in range(n_head)],
                                axis=-1)                            # (BT, C)
        att = jnp.dot(o_cat.astype(jnp.bfloat16), wproj_ref[l],
                      preferred_element_type=jnp.float32)           # one MXU push
        x = x + att + row(base + 4, C)                              # resid dropout = id (eval)

        # -------- x = x + FFN(LN2(x)) --------
        h2 = _layernorm(x, row(base + 2, C), row(base + 3, C))
        f = jnp.dot(h2.astype(jnp.bfloat16), w1_ref[l],
                    preferred_element_type=jnp.float32) + row(base + 5, C4)
        f = _gelu(f)
        f = jnp.dot(f.astype(jnp.bfloat16), w2_ref[l],
                    preferred_element_type=jnp.float32) + row(base + 6, C)
        x = x + f

    # -------- final LN + lm_head (lane-dense padded vocab) --------
    fbase = 7 * n_layer
    xh = _layernorm(x, row(fbase + 0, C), row(fbase + 1, C))
    o_ref[...] = jnp.dot(xh.astype(jnp.bfloat16), lmw_ref[...],
                         preferred_element_type=jnp.float32) + slab_ref[fbase + 2:fbase + 3, :]


# ------------------------------ parameters ----------------------------------
def init_params(key):
    C, H, L = N_EMBED, N_HEAD, N_LAYER
    D = C // H
    scale = 1.0 / math.sqrt(D)

    def nrm(k, shape):
        return (0.02 * jax.random.normal(k, shape)).astype(jnp.float32)

    keys = jax.random.split(key, 3 + L)

    tok = nrm(keys[0], (VOCAB_SIZE, C))
    tok_pad = jnp.zeros((VROWS, C), jnp.float32).at[:VOCAB_SIZE].set(tok)
    pos = nrm(keys[1], (BLOCK_SIZE, C))
    lm_w = nrm(keys[2], (C, VOCAB_SIZE))
    lm_w_pad = jnp.zeros((C, VPAD), jnp.float32).at[:, :VOCAB_SIZE].set(lm_w)

    wqkv_l, wproj_l, w1_l, w2_l = [], [], [], []
    for l in range(L):
        kl = jax.random.split(keys[3 + l], 6)
        wq, wk, wv = nrm(kl[0], (C, C)), nrm(kl[1], (C, C)), nrm(kl[2], (C, C))
        wp = nrm(kl[3], (C, C))
        w1 = nrm(kl[4], (C, 4 * C))
        w2 = nrm(kl[5], (4 * C, C))
        # fused lane-dense QKV weight (C, 3C); attention scale folded into Q columns
        wqkv_l.append(jnp.concatenate([wq * scale, wk, wv], axis=1))
        wproj_l.append(wp)                                          # (C, C)
        w1_l.append(w1)
        w2_l.append(w2)

    # pack all tiny f32 vectors (LN gammas/betas, linear biases, lm_head bias) into one slab
    n_rows = 7 * L + 3
    slab = jnp.zeros((n_rows, VPAD), jnp.float32)
    for l in range(L):
        base = 7 * l
        slab = slab.at[base + 0, :C].set(1.0)        # ln1 gamma
        slab = slab.at[base + 2, :C].set(1.0)        # ln2 gamma
        # rows base+1 (ln1 beta), base+3 (ln2 beta), base+4 (proj bias),
        # base+5 (fc1 bias), base+6 (fc2 bias) stay zero (PyTorch init)
    slab = slab.at[7 * L + 0, :C].set(1.0)           # final LN gamma
    # row 7L+1: final LN beta = 0 ; row 7L+2: lm_head bias = 0

    return {
        "tok_emb": tok_pad.astype(jnp.bfloat16),                    # (16, C)  bf16
        "pos_emb": pos,                                             # (Bs, C)  f32
        "wqkv": jnp.stack(wqkv_l).astype(jnp.bfloat16),             # (L, C, 3C)
        "wproj": jnp.stack(wproj_l).astype(jnp.bfloat16),           # (L, C, C)
        "w1": jnp.stack(w1_l).astype(jnp.bfloat16),                 # (L, C, 4C)
        "w2": jnp.stack(w2_l).astype(jnp.bfloat16),                 # (L, 4C, C)
        "lm_w": lm_w_pad.astype(jnp.bfloat16),                      # (C, 128)
        "slab": slab,                                               # (7L+3, 128) f32
    }


# ------------------------------ forward pass ---------------------------------
@jax.jit
def gpt_forward(params, idx):
    # idx: (B, T_in) int32 token ids; crop to last block_size tokens (as in reference).
    idx = idx[:, -BLOCK_SIZE:]
    B, T = idx.shape
    BT = B * T
    idx2 = idx.reshape(BT, 1).astype(jnp.int32)

    # positional slab: reference uses positions arange(block_size - T, block_size)
    pos_slab = jnp.tile(params["pos_emb"][BLOCK_SIZE - T:, :], (B, 1))     # (BT, C) f32

    # static causal + same-sequence (block-diagonal) additive mask over flattened B*T rows
    r = jnp.arange(BT)[:, None]
    c = jnp.arange(BT)[None, :]
    valid = ((r // T) == (c // T)) & (r >= c)
    attn_bias = jnp.where(valid, 0.0, -1e30).astype(jnp.float32)           # (BT, BT)

    kernel = functools.partial(gpt_kernel, batch=B, seq=T,
                               n_head=N_HEAD, n_layer=N_LAYER)
    vmem = pl.BlockSpec(memory_space=pltpu.MemorySpace.VMEM)
    out = pl.pallas_call(
        kernel,
        out_shape=jax.ShapeDtypeStruct((BT, VPAD), jnp.float32),
        in_specs=[vmem] * 10,
        out_specs=vmem,
    )(idx2, params["tok_emb"], pos_slab, attn_bias,
      params["wqkv"], params["wproj"], params["w1"], params["w2"],
      params["lm_w"], params["slab"])

    logits = out.reshape(B, T, VPAD)[:, :, :VOCAB_SIZE]
    # TODO(synk): training losses (cross_entropy / masked / distance_weighted variants)
    # not implemented; this reproduces the targets=None inference path.
    return logits, None


# --------------------------------- main --------------------------------------
if __name__ == "__main__":
    key = jax.random.PRNGKey(0)
    pkey, ikey = jax.random.split(key)
    params = init_params(pkey)
    idx = jax.random.randint(ikey, (BATCH, BLOCK_SIZE), 0, VOCAB_SIZE, dtype=jnp.int32)

    logits, loss = gpt_forward(params, idx)
    logits = jax.block_until_ready(logits)

    assert logits.shape == (BATCH, BLOCK_SIZE, VOCAB_SIZE), logits.shape
    assert loss is None
    assert bool(jnp.all(jnp.isfinite(logits)))
    print("KERNEL_OK")
</pallas_src>

<mosaic_0001>
module attributes {stable_mosaic.version = 11 : i64} {
  func.func @gpt_kernel(%arg0: memref<16x1xi32, #tpu.memory_space<vmem>>, %arg1: memref<16x32xbf16, #tpu.memory_space<vmem>>, %arg2: memref<16x32xf32, #tpu.memory_space<vmem>>, %arg3: memref<16x16xf32, #tpu.memory_space<vmem>>, %arg4: memref<2x32x96xbf16, #tpu.memory_space<vmem>>, %arg5: memref<2x32x32xbf16, #tpu.memory_space<vmem>>, %arg6: memref<2x32x128xbf16, #tpu.memory_space<vmem>>, %arg7: memref<2x128x32xbf16, #tpu.memory_space<vmem>>, %arg8: memref<32x128xbf16, #tpu.memory_space<vmem>>, %arg9: memref<17x128xf32, #tpu.memory_space<vmem>>, %arg10: memref<16x128xf32, #tpu.memory_space<vmem>>) attributes {dimension_semantics = [], scalar_prefetch = 0 : i64, scratch_operands = 0 : i64, tpu.core_type = #tpu.core_type<tc>} {
    %c0 = arith.constant 0 : index
    %c0_0 = arith.constant 0 : index
    %0 = vector.load %arg0[%c0, %c0_0] : memref<16x1xi32, #tpu.memory_space<vmem>>, vector<16x1xi32>
    %1 = tpu.iota {dimensions = array<i32: 1>} : vector<16x16xi32>
    %2 = vector.broadcast %0 : vector<16x1xi32> to vector<16x16xi32>
    %3 = arith.cmpi eq, %1, %2 : vector<16x16xi32>
    %4 = arith.extui %3 : vector<16x16xi1> to vector<16x16xi32>
    %5 = arith.sitofp %4 : vector<16x16xi32> to vector<16x16xf32>
    %6 = arith.truncf %5 : vector<16x16xf32> to vector<16x16xbf16>
    %c0_1 = arith.constant 0 : index
    %c0_2 = arith.constant 0 : index
    %7 = vector.load %arg1[%c0_1, %c0_2] : memref<16x32xbf16, #tpu.memory_space<vmem>>, vector<16x32xbf16>
    %cst = arith.constant dense<0.000000e+00> : vector<16x32xf32>
    %8 = tpu.matmul %6, %7, %cst {dimension_numbers = #tpu.dot_dimension_numbers<[1], [0], [0], [1], [0, 0, 1, 1], [], []>} : vector<16x16xbf16>, vector<16x32xbf16>, vector<16x32xf32> -> vector<16x32xf32>
    %c0_3 = arith.constant 0 : index
    %c0_4 = arith.constant 0 : index
    %9 = vector.load %arg2[%c0_3, %c0_4] : memref<16x32xf32, #tpu.memory_space<vmem>>, vector<16x32xf32>
    %10 = arith.addf %8, %9 : vector<16x32xf32>
    %c0_5 = arith.constant 0 : index
    %c0_6 = arith.constant 0 : index
    %11 = vector.load %arg3[%c0_5, %c0_6] : memref<16x16xf32, #tpu.memory_space<vmem>>, vector<16x16xf32>
    %c0_7 = arith.constant 0 : index
    %c0_8 = arith.constant 0 : index
    %12 = vector.load %arg9[%c0_7, %c0_8] : memref<17x128xf32, #tpu.memory_space<vmem>>, vector<1x32xf32>
    %c1 = arith.constant 1 : index
    %c0_9 = arith.constant 0 : index
    %13 = vector.load %arg9[%c1, %c0_9] : memref<17x128xf32, #tpu.memory_space<vmem>>, vector<1x32xf32>
    %cst_10 = arith.constant dense<0.000000e+00> : vector<16xf32>
    %14 = vector.multi_reduction <add>, %10, %cst_10 [1] : vector<16x32xf32> to vector<16xf32>
    %15 = vector.shape_cast %14 : vector<16xf32> to vector<16x1xf32>
    %cst_11 = arith.constant 3.200000e+01 : f32
    %16 = vector.broadcast %cst_11 : f32 to vector<16x1xf32>
    %17 = arith.divf %15, %16 : vector<16x1xf32>
    %18 = vector.broadcast %17 : vector<16x1xf32> to vector<16x32xf32>
    %19 = arith.subf %10, %18 : vector<16x32xf32>
    %20 = arith.mulf %19, %19 : vector<16x32xf32>
    %cst_12 = arith.constant dense<0.000000e+00> : vector<16xf32>
    %21 = vector.multi_reduction <add>, %20, %cst_12 [1] : vector<16x32xf32> to vector<16xf32>
    %22 = vector.shape_cast %21 : vector<16xf32> to vector<16x1xf32>
    %cst_13 = arith.constant 3.200000e+01 : f32
    %23 = vector.broadcast %cst_13 : f32 to vector<16x1xf32>
    %24 = arith.divf %22, %23 : vector<16x1xf32>
    %25 = vector.broadcast %17 : vector<16x1xf32> to vector<16x32xf32>
    %26 = arith.subf %10, %25 : vector<16x32xf32>
    %cst_14 = arith.constant 9.99999974E-6 : f32
    %27 = vector.broadcast %cst_14 : f32 to vector<16x1xf32>
    %28 = arith.addf %24, %27 : vector<16x1xf32>
    %29 = math.rsqrt %28 : vector<16x1xf32>
    %30 = vector.broadcast %29 : vector<16x1xf32> to vector<16x32xf32>
    %31 = arith.mulf %26, %30 : vector<16x32xf32>
    %32 = vector.broadcast %12 : vector<1x32xf32> to vector<16x32xf32>
    %33 = arith.mulf %31, %32 : vector<16x32xf32>
    %34 = vector.broadcast %13 : vector<1x32xf32> to vector<16x32xf32>
    %35 = arith.addf %33, %34 : vector<16x32xf32>
    %36 = arith.truncf %35 : vector<16x32xf32> to vector<16x32xbf16>
    %c0_15 = arith.constant 0 : index
    %c0_16 = arith.constant 0 : index
    %c0_17 = arith.constant 0 : index
    %37 = vector.load %arg4[%c0_15, %c0_16, %c0_17] : memref<2x32x96xbf16, #tpu.memory_space<vmem>>, vector<1x32x96xbf16>
    %38 = vector.shape_cast %37 : vector<1x32x96xbf16> to vector<32x96xbf16>
    %cst_18 = arith.constant dense<0.000000e+00> : vector<16x96xf32>
    %39 = tpu.matmul %36, %38, %cst_18 {dimension_numbers = #tpu.dot_dimension_numbers<[1], [0], [0], [1], [0, 0, 1, 1], [], []>} : vector<16x32xbf16>, vector<32x96xbf16>, vector<16x96xf32> -> vector<16x96xf32>
    %40 = vector.extract_strided_slice %39 {offsets = [0, 0], sizes = [16, 8], strides = [1, 1]} : vector<16x96xf32> to vector<16x8xf32>
    %41 = vector.extract_strided_slice %39 {offsets = [0, 8], sizes = [16, 8], strides = [1, 1]} : vector<16x96xf32> to vector<16x8xf32>
    %42 = vector.extract_strided_slice %39 {offsets = [0, 16], sizes = [16, 8], strides = [1, 1]} : vector<16x96xf32> to vector<16x8xf32>
    %43 = vector.extract_strided_slice %39 {offsets = [0, 24], sizes = [16, 8], strides = [1, 1]} : vector<16x96xf32> to vector<16x8xf32>
    %44 = vector.shape_cast %40 : vector<16x8xf32> to vector<1x16x8xf32>
    %45 = vector.shape_cast %41 : vector<16x8xf32> to vector<1x16x8xf32>
    %46 = vector.shape_cast %42 : vector<16x8xf32> to vector<1x16x8xf32>
    %47 = vector.shape_cast %43 : vector<16x8xf32> to vector<1x16x8xf32>
    %48 = tpu.concatenate %44, %45, %46, %47 in 0 : vector<1x16x8xf32>, vector<1x16x8xf32>, vector<1x16x8xf32>, vector<1x16x8xf32> -> vector<4x16x8xf32>
    %49 = arith.truncf %48 : vector<4x16x8xf32> to vector<4x16x8xbf16>
    %50 = vector.extract_strided_slice %39 {offsets = [0, 32], sizes = [16, 8], strides = [1, 1]} : vector<16x96xf32> to vector<16x8xf32>
    %51 = vector.extract_strided_slice %39 {offsets = [0, 40], sizes = [16, 8], strides = [1, 1]} : vector<16x96xf32> to vector<16x8xf32>
    %52 = vector.extract_strided_slice %39 {offsets = [0, 48], sizes = [16, 8], strides = [1, 1]} : vector<16x96xf32> to vector<16x8xf32>
    %53 = vector.extract_strided_slice %39 {offsets = [0, 56], sizes = [16, 8], strides = [1, 1]} : vector<16x96xf32> to vector<16x8xf32>
    %54 = vector.shape_cast %50 : vector<16x8xf32> to vector<1x16x8xf32>
    %55 = vector.shape_cast %51 : vector<16x8xf32> to vector<1x16x8xf32>
    %56 = vector.shape_cast %52 : vector<16x8xf32> to vector<1x16x8xf32>
    %57 = vector.shape_cast %53 : vector<16x8xf32> to vector<1x16x8xf32>
    %58 = tpu.concatenate %54, %55, %56, %57 in 0 : vector<1x16x8xf32>, vector<1x16x8xf32>, vector<1x16x8xf32>, vector<1x16x8xf32> -> vector<4x16x8xf32>
    %59 = arith.truncf %58 : vector<4x16x8xf32> to vector<4x16x8xbf16>
    %60 = vector.extract_strided_slice %39 {offsets = [0, 64], sizes = [16, 8], strides = [1, 1]} : vector<16x96xf32> to vector<16x8xf32>
    %61 = vector.extract_strided_slice %39 {offsets = [0, 72], sizes = [16, 8], strides = [1, 1]} : vector<16x96xf32> to vector<16x8xf32>
    %62 = vector.extract_strided_slice %39 {offsets = [0, 80], sizes = [16, 8], strides = [1, 1]} : vector<16x96xf32> to vector<16x8xf32>
    %63 = vector.extract_strided_slice %39 {offsets = [0, 88], sizes = [16, 8], strides = [1, 1]} : vector<16x96xf32> to vector<16x8xf32>
    %64 = vector.shape_cast %60 : vector<16x8xf32> to vector<1x16x8xf32>
    %65 = vector.shape_cast %61 : vector<16x8xf32> to vector<1x16x8xf32>
    %66 = vector.shape_cast %62 : vector<16x8xf32> to vector<1x16x8xf32>
    %67 = vector.shape_cast %63 : vector<16x8xf32> to vector<1x16x8xf32>
    %68 = tpu.concatenate %64, %65, %66, %67 in 0 : vector<1x16x8xf32>, vector<1x16x8xf32>, vector<1x16x8xf32>, vector<1x16x8xf32> -> vector<4x16x8xf32>
    %69 = arith.truncf %68 : vector<4x16x8xf32> to vector<4x16x8xbf16>
    "tpu.trace_start"() <{level = 10 : i32, message = "htd,hsd->hts"}> : () -> ()
    %cst_19 = arith.constant dense<0.000000e+00> : vector<4x16x16xf32>
    %70 = tpu.matmul %49, %59, %cst_19 {dimension_numbers = #tpu.dot_dimension_numbers<[2], [2], [1], [1], [0, 0, 0, 1, 1, 1], [0], [0]>} : vector<4x16x8xbf16>, vector<4x16x8xbf16>, vector<4x16x16xf32> -> vector<4x16x16xf32>
    "tpu.trace_stop"() : () -> ()
    %71 = vector.shape_cast %11 : vector<16x16xf32> to vector<1x16x16xf32>
    %72 = vector.broadcast %71 : vector<1x16x16xf32> to vector<4x16x16xf32>
    %73 = arith.addf %70, %72 : vector<4x16x16xf32>
    %cst_20 = arith.constant dense<0xFF800000> : vector<4x16xf32>
    %74 = vector.multi_reduction <maximumf>, %73, %cst_20 [2] : vector<4x16x16xf32> to vector<4x16xf32>
    %75 = vector.shape_cast %74 : vector<4x16xf32> to vector<4x16x1xf32>
    %76 = vector.broadcast %75 : vector<4x16x1xf32> to vector<4x16x16xf32>
    %77 = arith.subf %73, %76 : vector<4x16x16xf32>
    %78 = math.exp %77 : vector<4x16x16xf32>
    %cst_21 = arith.constant dense<0.000000e+00> : vector<4x16xf32>
    %79 = vector.multi_reduction <add>, %78, %cst_21 [2] : vector<4x16x16xf32> to vector<4x16xf32>
    %80 = vector.shape_cast %79 : vector<4x16xf32> to vector<4x16x1xf32>
    %81 = vector.broadcast %80 : vector<4x16x1xf32> to vector<4x16x16xf32>
    %82 = arith.divf %78, %81 : vector<4x16x16xf32>
    %83 = arith.truncf %82 : vector<4x16x16xf32> to vector<4x16x16xbf16>
    "tpu.trace_start"() <{level = 10 : i32, message = "hts,hsd->htd"}> : () -> ()
    %cst_22 = arith.constant dense<0.000000e+00> : vector<4x16x8xf32>
    %84 = tpu.matmul %83, %69, %cst_22 {dimension_numbers = #tpu.dot_dimension_numbers<[2], [1], [1], [2], [0, 0, 0, 1, 1, 2], [0], [0]>} : vector<4x16x16xbf16>, vector<4x16x8xbf16>, vector<4x16x8xf32> -> vector<4x16x8xf32>
    "tpu.trace_stop"() : () -> ()
    %85 = vector.extract_strided_slice %84 {offsets = [0, 0, 0], sizes = [1, 16, 8], strides = [1, 1, 1]} : vector<4x16x8xf32> to vector<1x16x8xf32>
    %86 = vector.shape_cast %85 : vector<1x16x8xf32> to vector<16x8xf32>
    %87 = vector.extract_strided_slice %84 {offsets = [1, 0, 0], sizes = [1, 16, 8], strides = [1, 1, 1]} : vector<4x16x8xf32> to vector<1x16x8xf32>
    %88 = vector.shape_cast %87 : vector<1x16x8xf32> to vector<16x8xf32>
    %89 = vector.extract_strided_slice %84 {offsets = [2, 0, 0], sizes = [1, 16, 8], strides = [1, 1, 1]} : vector<4x16x8xf32> to vector<1x16x8xf32>
    %90 = vector.shape_cast %89 : vector<1x16x8xf32> to vector<16x8xf32>
    %91 = vector.extract_strided_slice %84 {offsets = [3, 0, 0], sizes = [1, 16, 8], strides = [1, 1, 1]} : vector<4x16x8xf32> to vector<1x16x8xf32>
    %92 = vector.shape_cast %91 : vector<1x16x8xf32> to vector<16x8xf32>
    %93 = tpu.concatenate %86, %88, %90, %92 in 1 : vector<16x8xf32>, vector<16x8xf32>, vector<16x8xf32>, vector<16x8xf32> -> vector<16x32xf32>
    %94 = arith.truncf %93 : vector<16x32xf32> to vector<16x32xbf16>
    %c0_23 = arith.constant 0 : index
    %c0_24 = arith.constant 0 : index
    %c0_25 = arith.constant 0 : index
    %95 = vector.load %arg5[%c0_23, %c0_24, %c0_25] : memref<2x32x32xbf16, #tpu.memory_space<vmem>>, vector<1x32x32xbf16>
    %96 = vector.shape_cast %95 : vector<1x32x32xbf16> to vector<32x32xbf16>
    %cst_26 = arith.constant dense<0.000000e+00> : vector<16x32xf32>
    %97 = tpu.matmul %94, %96, %cst_26 {dimension_numbers = #tpu.dot_dimension_numbers<[1], [0], [0], [1], [0, 0, 1, 1], [], []>} : vector<16x32xbf16>, vector<32x32xbf16>, vector<16x32xf32> -> vector<16x32xf32>
    %98 = arith.addf %10, %97 : vector<16x32xf32>
    %c4 = arith.constant 4 : index
    %c0_27 = arith.constant 0 : index
    %99 = vector.load %arg9[%c4, %c0_27] : memref<17x128xf32, #tpu.memory_space<vmem>>, vector<1x32xf32>
    %100 = vector.broadcast %99 : vector<1x32xf32> to vector<16x32xf32>
    %101 = arith.addf %98, %100 : vector<16x32xf32>
    %c2 = arith.constant 2 : index
    %c0_28 = arith.constant 0 : index
    %102 = vector.load %arg9[%c2, %c0_28] : memref<17x128xf32, #tpu.memory_space<vmem>>, vector<1x32xf32>
    %c3 = arith.constant 3 : index
    %c0_29 = arith.constant 0 : index
    %103 = vector.load %arg9[%c3, %c0_29] : memref<17x128xf32, #tpu.memory_space<vmem>>, vector<1x32xf32>
    %cst_30 = arith.constant dense<0.000000e+00> : vector<16xf32>
    %104 = vector.multi_reduction <add>, %101, %cst_30 [1] : vector<16x32xf32> to vector<16xf32>
    %105 = vector.shape_cast %104 : vector<16xf32> to vector<16x1xf32>
    %cst_31 = arith.constant 3.200000e+01 : f32
    %106 = vector.broadcast %cst_31 : f32 to vector<16x1xf32>
    %107 = arith.divf %105, %106 : vector<16x1xf32>
    %108 = vector.broadcast %107 : vector<16x1xf32> to vector<16x32xf32>
    %109 = arith.subf %101, %108 : vector<16x32xf32>
    %110 = arith.mulf %109, %109 : vector<16x32xf32>
    %cst_32 = arith.constant dense<0.000000e+00> : vector<16xf32>
    %111 = vector.multi_reduction <add>, %110, %cst_32 [1] : vector<16x32xf32> to vector<16xf32>
    %112 = vector.shape_cast %111 : vector<16xf32> to vector<16x1xf32>
    %cst_33 = arith.constant 3.200000e+01 : f32
    %113 = vector.broadcast %cst_33 : f32 to vector<16x1xf32>
    %114 = arith.divf %112, %113 : vector<16x1xf32>
    %115 = vector.broadcast %107 : vector<16x1xf32> to vector<16x32xf32>
    %116 = arith.subf %101, %115 : vector<16x32xf32>
    %cst_34 = arith.constant 9.99999974E-6 : f32
    %117 = vector.broadcast %cst_34 : f32 to vector<16x1xf32>
    %118 = arith.addf %114, %117 : vector<16x1xf32>
    %119 = math.rsqrt %118 : vector<16x1xf32>
    %120 = vector.broadcast %119 : vector<16x1xf32> to vector<16x32xf32>
    %121 = arith.mulf %116, %120 : vector<16x32xf32>
    %122 = vector.broadcast %102 : vector<1x32xf32> to vector<16x32xf32>
    %123 = arith.mulf %121, %122 : vector<16x32xf32>
    %124 = vector.broadcast %103 : vector<1x32xf32> to vector<16x32xf32>
    %125 = arith.addf %123, %124 : vector<16x32xf32>
    %126 = arith.truncf %125 : vector<16x32xf32> to vector<16x32xbf16>
    %c0_35 = arith.constant 0 : index
    %c0_36 = arith.constant 0 : index
    %c0_37 = arith.constant 0 : index
    %127 = vector.load %arg6[%c0_35, %c0_36, %c0_37] : memref<2x32x128xbf16, #tpu.memory_space<vmem>>, vector<1x32x128xbf16>
    %128 = vector.shape_cast %127 : vector<1x32x128xbf16> to vector<32x128xbf16>
    %cst_38 = arith.constant dense<0.000000e+00> : vector<16x128xf32>
    %129 = tpu.matmul %126, %128, %cst_38 {dimension_numbers = #tpu.dot_dimension_numbers<[1], [0], [0], [1], [0, 0, 1, 1], [], []>} : vector<16x32xbf16>, vector<32x128xbf16>, vector<16x128xf32> -> vector<16x128xf32>
    %c5 = arith.constant 5 : index
    %c0_39 = arith.constant 0 : index
    %130 = vector.load %arg9[%c5, %c0_39] : memref<17x128xf32, #tpu.memory_space<vmem>>, vector<1x128xf32>
    %131 = vector.broadcast %130 : vector<1x128xf32> to vector<16x128xf32>
    %132 = arith.addf %129, %131 : vector<16x128xf32>
    %cst_40 = arith.constant 5.000000e-01 : f32
    %133 = vector.broadcast %cst_40 : f32 to vector<16x128xf32>
    %134 = arith.mulf %133, %132 : vector<16x128xf32>
    %cst_41 = arith.constant 0.707106769 : f32
    %135 = vector.broadcast %cst_41 : f32 to vector<16x128xf32>
    %136 = arith.mulf %132, %135 : vector<16x128xf32>
    %137 = math.erf %136 : vector<16x128xf32>
    %cst_42 = arith.constant 1.000000e+00 : f32
    %138 = vector.broadcast %cst_42 : f32 to vector<16x128xf32>
    %139 = arith.addf %138, %137 : vector<16x128xf32>
    %140 = arith.mulf %134, %139 : vector<16x128xf32>
    %141 = arith.truncf %140 : vector<16x128xf32> to vector<16x128xbf16>
    %c0_43 = arith.constant 0 : index
    %c0_44 = arith.constant 0 : index
    %c0_45 = arith.constant 0 : index
    %142 = vector.load %arg7[%c0_43, %c0_44, %c0_45] : memref<2x128x32xbf16, #tpu.memory_space<vmem>>, vector<1x128x32xbf16>
    %143 = vector.shape_cast %142 : vector<1x128x32xbf16> to vector<128x32xbf16>
    %cst_46 = arith.constant dense<0.000000e+00> : vector<16x32xf32>
    %144 = tpu.matmul %141, %143, %cst_46 {dimension_numbers = #tpu.dot_dimension_numbers<[1], [0], [0], [1], [0, 0, 1, 1], [], []>} : vector<16x128xbf16>, vector<128x32xbf16>, vector<16x32xf32> -> vector<16x32xf32>
    %c6 = arith.constant 6 : index
    %c0_47 = arith.constant 0 : index
    %145 = vector.load %arg9[%c6, %c0_47] : memref<17x128xf32, #tpu.memory_space<vmem>>, vector<1x32xf32>
    %146 = vector.broadcast %145 : vector<1x32xf32> to vector<16x32xf32>
    %147 = arith.addf %144, %146 : vector<16x32xf32>
    %148 = arith.addf %101, %147 : vector<16x32xf32>
    %c7 = arith.constant 7 : index
    %c0_48 = arith.constant 0 : index
    %149 = vector.load %arg9[%c7, %c0_48] : memref<17x128xf32, #tpu.memory_space<vmem>>, vector<1x32xf32>
    %c8 = arith.constant 8 : index
    %c0_49 = arith.constant 0 : index
    %150 = vector.load %arg9[%c8, %c0_49] : memref<17x128xf32, #tpu.memory_space<vmem>>, vector<1x32xf32>
    %cst_50 = arith.constant dense<0.000000e+00> : vector<16xf32>
    %151 = vector.multi_reduction <add>, %148, %cst_50 [1] : vector<16x32xf32> to vector<16xf32>
    %152 = vector.shape_cast %151 : vector<16xf32> to vector<16x1xf32>
    %cst_51 = arith.constant 3.200000e+01 : f32
    %153 = vector.broadcast %cst_51 : f32 to vector<16x1xf32>
    %154 = arith.divf %152, %153 : vector<16x1xf32>
    %155 = vector.broadcast %154 : vector<16x1xf32> to vector<16x32xf32>
    %156 = arith.subf %148, %155 : vector<16x32xf32>
    %157 = arith.mulf %156, %156 : vector<16x32xf32>
    %cst_52 = arith.constant dense<0.000000e+00> : vector<16xf32>
    %158 = vector.multi_reduction <add>, %157, %cst_52 [1] : vector<16x32xf32> to vector<16xf32>
    %159 = vector.shape_cast %158 : vector<16xf32> to vector<16x1xf32>
    %cst_53 = arith.constant 3.200000e+01 : f32
    %160 = vector.broadcast %cst_53 : f32 to vector<16x1xf32>
    %161 = arith.divf %159, %160 : vector<16x1xf32>
    %162 = vector.broadcast %154 : vector<16x1xf32> to vector<16x32xf32>
    %163 = arith.subf %148, %162 : vector<16x32xf32>
    %cst_54 = arith.constant 9.99999974E-6 : f32
    %164 = vector.broadcast %cst_54 : f32 to vector<16x1xf32>
    %165 = arith.addf %161, %164 : vector<16x1xf32>
    %166 = math.rsqrt %165 : vector<16x1xf32>
    %167 = vector.broadcast %166 : vector<16x1xf32> to vector<16x32xf32>
    %168 = arith.mulf %163, %167 : vector<16x32xf32>
    %169 = vector.broadcast %149 : vector<1x32xf32> to vector<16x32xf32>
    %170 = arith.mulf %168, %169 : vector<16x32xf32>
    %171 = vector.broadcast %150 : vector<1x32xf32> to vector<16x32xf32>
    %172 = arith.addf %170, %171 : vector<16x32xf32>
    %173 = arith.truncf %172 : vector<16x32xf32> to vector<16x32xbf16>
    %c1_55 = arith.constant 1 : index
    %c0_56 = arith.constant 0 : index
    %c0_57 = arith.constant 0 : index
    %174 = vector.load %arg4[%c1_55, %c0_56, %c0_57] : memref<2x32x96xbf16, #tpu.memory_space<vmem>>, vector<1x32x96xbf16>
    %175 = vector.shape_cast %174 : vector<1x32x96xbf16> to vector<32x96xbf16>
    %cst_58 = arith.constant dense<0.000000e+00> : vector<16x96xf32>
    %176 = tpu.matmul %173, %175, %cst_58 {dimension_numbers = #tpu.dot_dimension_numbers<[1], [0], [0], [1], [0, 0, 1, 1], [], []>} : vector<16x32xbf16>, vector<32x96xbf16>, vector<16x96xf32> -> vector<16x96xf32>
    %177 = vector.extract_strided_slice %176 {offsets = [0, 0], sizes = [16, 8], strides = [1, 1]} : vector<16x96xf32> to vector<16x8xf32>
    %178 = vector.extract_strided_slice %176 {offsets = [0, 8], sizes = [16, 8], strides = [1, 1]} : vector<16x96xf32> to vector<16x8xf32>
    %179 = vector.extract_strided_slice %176 {offsets = [0, 16], sizes = [16, 8], strides = [1, 1]} : vector<16x96xf32> to vector<16x8xf32>
    %180 = vector.extract_strided_slice %176 {offsets = [0, 24], sizes = [16, 8], strides = [1, 1]} : vector<16x96xf32> to vector<16x8xf32>
    %181 = vector.shape_cast %177 : vector<16x8xf32> to vector<1x16x8xf32>
    %182 = vector.shape_cast %178 : vector<16x8xf32> to vector<1x16x8xf32>
    %183 = vector.shape_cast %179 : vector<16x8xf32> to vector<1x16x8xf32>
    %184 = vector.shape_cast %180 : vector<16x8xf32> to vector<1x16x8xf32>
    %185 = tpu.concatenate %181, %182, %183, %184 in 0 : vector<1x16x8xf32>, vector<1x16x8xf32>, vector<1x16x8xf32>, vector<1x16x8xf32> -> vector<4x16x8xf32>
    %186 = arith.truncf %185 : vector<4x16x8xf32> to vector<4x16x8xbf16>
    %187 = vector.extract_strided_slice %176 {offsets = [0, 32], sizes = [16, 8], strides = [1, 1]} : vector<16x96xf32> to vector<16x8xf32>
    %188 = vector.extract_strided_slice %176 {offsets = [0, 40], sizes = [16, 8], strides = [1, 1]} : vector<16x96xf32> to vector<16x8xf32>
    %189 = vector.extract_strided_slice %176 {offsets = [0, 48], sizes = [16, 8], strides = [1, 1]} : vector<16x96xf32> to vector<16x8xf32>
    %190 = vector.extract_strided_slice %176 {offsets = [0, 56], sizes = [16, 8], strides = [1, 1]} : vector<16x96xf32> to vector<16x8xf32>
    %191 = vector.shape_cast %187 : vector<16x8xf32> to vector<1x16x8xf32>
    %192 = vector.shape_cast %188 : vector<16x8xf32> to vector<1x16x8xf32>
    %193 = vector.shape_cast %189 : vector<16x8xf32> to vector<1x16x8xf32>
    %194 = vector.shape_cast %190 : vector<16x8xf32> to vector<1x16x8xf32>
    %195 = tpu.concatenate %191, %192, %193, %194 in 0 : vector<1x16x8xf32>, vector<1x16x8xf32>, vector<1x16x8xf32>, vector<1x16x8xf32> -> vector<4x16x8xf32>
    %196 = arith.truncf %195 : vector<4x16x8xf32> to vector<4x16x8xbf16>
    %197 = vector.extract_strided_slice %176 {offsets = [0, 64], sizes = [16, 8], strides = [1, 1]} : vector<16x96xf32> to vector<16x8xf32>
    %198 = vector.extract_strided_slice %176 {offsets = [0, 72], sizes = [16, 8], strides = [1, 1]} : vector<16x96xf32> to vector<16x8xf32>
    %199 = vector.extract_strided_slice %176 {offsets = [0, 80], sizes = [16, 8], strides = [1, 1]} : vector<16x96xf32> to vector<16x8xf32>
    %200 = vector.extract_strided_slice %176 {offsets = [0, 88], sizes = [16, 8], strides = [1, 1]} : vector<16x96xf32> to vector<16x8xf32>
    %201 = vector.shape_cast %197 : vector<16x8xf32> to vector<1x16x8xf32>
    %202 = vector.shape_cast %198 : vector<16x8xf32> to vector<1x16x8xf32>
    %203 = vector.shape_cast %199 : vector<16x8xf32> to vector<1x16x8xf32>
    %204 = vector.shape_cast %200 : vector<16x8xf32> to vector<1x16x8xf32>
    %205 = tpu.concatenate %201, %202, %203, %204 in 0 : vector<1x16x8xf32>, vector<1x16x8xf32>, vector<1x16x8xf32>, vector<1x16x8xf32> -> vector<4x16x8xf32>
    %206 = arith.truncf %205 : vector<4x16x8xf32> to vector<4x16x8xbf16>
    "tpu.trace_start"() <{level = 10 : i32, message = "htd,hsd->hts"}> : () -> ()
    %cst_59 = arith.constant dense<0.000000e+00> : vector<4x16x16xf32>
    %207 = tpu.matmul %186, %196, %cst_59 {dimension_numbers = #tpu.dot_dimension_numbers<[2], [2], [1], [1], [0, 0, 0, 1, 1, 1], [0], [0]>} : vector<4x16x8xbf16>, vector<4x16x8xbf16>, vector<4x16x16xf32> -> vector<4x16x16xf32>
    "tpu.trace_stop"() : () -> ()
    %208 = vector.shape_cast %11 : vector<16x16xf32> to vector<1x16x16xf32>
    %209 = vector.broadcast %208 : vector<1x16x16xf32> to vector<4x16x16xf32>
    %210 = arith.addf %207, %209 : vector<4x16x16xf32>
    %cst_60 = arith.constant dense<0xFF800000> : vector<4x16xf32>
    %211 = vector.multi_reduction <maximumf>, %210, %cst_60 [2] : vector<4x16x16xf32> to vector<4x16xf32>
    %212 = vector.shape_cast %211 : vector<4x16xf32> to vector<4x16x1xf32>
    %213 = vector.broadcast %212 : vector<4x16x1xf32> to vector<4x16x16xf32>
    %214 = arith.subf %210, %213 : vector<4x16x16xf32>
    %215 = math.exp %214 : vector<4x16x16xf32>
    %cst_61 = arith.constant dense<0.000000e+00> : vector<4x16xf32>
    %216 = vector.multi_reduction <add>, %215, %cst_61 [2] : vector<4x16x16xf32> to vector<4x16xf32>
    %217 = vector.shape_cast %216 : vector<4x16xf32> to vector<4x16x1xf32>
    %218 = vector.broadcast %217 : vector<4x16x1xf32> to vector<4x16x16xf32>
    %219 = arith.divf %215, %218 : vector<4x16x16xf32>
    %220 = arith.truncf %219 : vector<4x16x16xf32> to vector<4x16x16xbf16>
    "tpu.trace_start"() <{level = 10 : i32, message = "hts,hsd->htd"}> : () -> ()
    %cst_62 = arith.constant dense<0.000000e+00> : vector<4x16x8xf32>
    %221 = tpu.matmul %220, %206, %cst_62 {dimension_numbers = #tpu.dot_dimension_numbers<[2], [1], [1], [2], [0, 0, 0, 1, 1, 2], [0], [0]>} : vector<4x16x16xbf16>, vector<4x16x8xbf16>, vector<4x16x8xf32> -> vector<4x16x8xf32>
    "tpu.trace_stop"() : () -> ()
    %222 = vector.extract_strided_slice %221 {offsets = [0, 0, 0], sizes = [1, 16, 8], strides = [1, 1, 1]} : vector<4x16x8xf32> to vector<1x16x8xf32>
    %223 = vector.shape_cast %222 : vector<1x16x8xf32> to vector<16x8xf32>
    %224 = vector.extract_strided_slice %221 {offsets = [1, 0, 0], sizes = [1, 16, 8], strides = [1, 1, 1]} : vector<4x16x8xf32> to vector<1x16x8xf32>
    %225 = vector.shape_cast %224 : vector<1x16x8xf32> to vector<16x8xf32>
    %226 = vector.extract_strided_slice %221 {offsets = [2, 0, 0], sizes = [1, 16, 8], strides = [1, 1, 1]} : vector<4x16x8xf32> to vector<1x16x8xf32>
    %227 = vector.shape_cast %226 : vector<1x16x8xf32> to vector<16x8xf32>
    %228 = vector.extract_strided_slice %221 {offsets = [3, 0, 0], sizes = [1, 16, 8], strides = [1, 1, 1]} : vector<4x16x8xf32> to vector<1x16x8xf32>
    %229 = vector.shape_cast %228 : vector<1x16x8xf32> to vector<16x8xf32>
    %230 = tpu.concatenate %223, %225, %227, %229 in 1 : vector<16x8xf32>, vector<16x8xf32>, vector<16x8xf32>, vector<16x8xf32> -> vector<16x32xf32>
    %231 = arith.truncf %230 : vector<16x32xf32> to vector<16x32xbf16>
    %c1_63 = arith.constant 1 : index
    %c0_64 = arith.constant 0 : index
    %c0_65 = arith.constant 0 : index
    %232 = vector.load %arg5[%c1_63, %c0_64, %c0_65] : memref<2x32x32xbf16, #tpu.memory_space<vmem>>, vector<1x32x32xbf16>
    %233 = vector.shape_cast %232 : vector<1x32x32xbf16> to vector<32x32xbf16>
    %cst_66 = arith.constant dense<0.000000e+00> : vector<16x32xf32>
    %234 = tpu.matmul %231, %233, %cst_66 {dimension_numbers = #tpu.dot_dimension_numbers<[1], [0], [0], [1], [0, 0, 1, 1], [], []>} : vector<16x32xbf16>, vector<32x32xbf16>, vector<16x32xf32> -> vector<16x32xf32>
    %235 = arith.addf %148, %234 : vector<16x32xf32>
    %c11 = arith.constant 11 : index
    %c0_67 = arith.constant 0 : index
    %236 = vector.load %arg9[%c11, %c0_67] : memref<17x128xf32, #tpu.memory_space<vmem>>, vector<1x32xf32>
    %237 = vector.broadcast %236 : vector<1x32xf32> to vector<16x32xf32>
    %238 = arith.addf %235, %237 : vector<16x32xf32>
    %c9 = arith.constant 9 : index
    %c0_68 = arith.constant 0 : index
    %239 = vector.load %arg9[%c9, %c0_68] : memref<17x128xf32, #tpu.memory_space<vmem>>, vector<1x32xf32>
    %c10 = arith.constant 10 : index
    %c0_69 = arith.constant 0 : index
    %240 = vector.load %arg9[%c10, %c0_69] : memref<17x128xf32, #tpu.memory_space<vmem>>, vector<1x32xf32>
    %cst_70 = arith.constant dense<0.000000e+00> : vector<16xf32>
    %241 = vector.multi_reduction <add>, %238, %cst_70 [1] : vector<16x32xf32> to vector<16xf32>
    %242 = vector.shape_cast %241 : vector<16xf32> to vector<16x1xf32>
    %cst_71 = arith.constant 3.200000e+01 : f32
    %243 = vector.broadcast %cst_71 : f32 to vector<16x1xf32>
    %244 = arith.divf %242, %243 : vector<16x1xf32>
    %245 = vector.broadcast %244 : vector<16x1xf32> to vector<16x32xf32>
    %246 = arith.subf %238, %245 : vector<16x32xf32>
    %247 = arith.mulf %246, %246 : vector<16x32xf32>
    %cst_72 = arith.constant dense<0.000000e+00> : vector<16xf32>
    %248 = vector.multi_reduction <add>, %247, %cst_72 [1] : vector<16x32xf32> to vector<16xf32>
    %249 = vector.shape_cast %248 : vector<16xf32> to vector<16x1xf32>
    %cst_73 = arith.constant 3.200000e+01 : f32
    %250 = vector.broadcast %cst_73 : f32 to vector<16x1xf32>
    %251 = arith.divf %249, %250 : vector<16x1xf32>
    %252 = vector.broadcast %244 : vector<16x1xf32> to vector<16x32xf32>
    %253 = arith.subf %238, %252 : vector<16x32xf32>
    %cst_74 = arith.constant 9.99999974E-6 : f32
    %254 = vector.broadcast %cst_74 : f32 to vector<16x1xf32>
    %255 = arith.addf %251, %254 : vector<16x1xf32>
    %256 = math.rsqrt %255 : vector<16x1xf32>
    %257 = vector.broadcast %256 : vector<16x1xf32> to vector<16x32xf32>
    %258 = arith.mulf %253, %257 : vector<16x32xf32>
    %259 = vector.broadcast %239 : vector<1x32xf32> to vector<16x32xf32>
    %260 = arith.mulf %258, %259 : vector<16x32xf32>
    %261 = vector.broadcast %240 : vector<1x32xf32> to vector<16x32xf32>
    %262 = arith.addf %260, %261 : vector<16x32xf32>
    %263 = arith.truncf %262 : vector<16x32xf32> to vector<16x32xbf16>
    %c1_75 = arith.constant 1 : index
    %c0_76 = arith.constant 0 : index
    %c0_77 = arith.constant 0 : index
    %264 = vector.load %arg6[%c1_75, %c0_76, %c0_77] : memref<2x32x128xbf16, #tpu.memory_space<vmem>>, vector<1x32x128xbf16>
    %265 = vector.shape_cast %264 : vector<1x32x128xbf16> to vector<32x128xbf16>
    %cst_78 = arith.constant dense<0.000000e+00> : vector<16x128xf32>
    %266 = tpu.matmul %263, %265, %cst_78 {dimension_numbers = #tpu.dot_dimension_numbers<[1], [0], [0], [1], [0, 0, 1, 1], [], []>} : vector<16x32xbf16>, vector<32x128xbf16>, vector<16x128xf32> -> vector<16x128xf32>
    %c12 = arith.constant 12 : index
    %c0_79 = arith.constant 0 : index
    %267 = vector.load %arg9[%c12, %c0_79] : memref<17x128xf32, #tpu.memory_space<vmem>>, vector<1x128xf32>
    %268 = vector.broadcast %267 : vector<1x128xf32> to vector<16x128xf32>
    %269 = arith.addf %266, %268 : vector<16x128xf32>
    %cst_80 = arith.constant 5.000000e-01 : f32
    %270 = vector.broadcast %cst_80 : f32 to vector<16x128xf32>
    %271 = arith.mulf %270, %269 : vector<16x128xf32>
    %cst_81 = arith.constant 0.707106769 : f32
    %272 = vector.broadcast %cst_81 : f32 to vector<16x128xf32>
    %273 = arith.mulf %269, %272 : vector<16x128xf32>
    %274 = math.erf %273 : vector<16x128xf32>
    %cst_82 = arith.constant 1.000000e+00 : f32
    %275 = vector.broadcast %cst_82 : f32 to vector<16x128xf32>
    %276 = arith.addf %275, %274 : vector<16x128xf32>
    %277 = arith.mulf %271, %276 : vector<16x128xf32>
    %278 = arith.truncf %277 : vector<16x128xf32> to vector<16x128xbf16>
    %c1_83 = arith.constant 1 : index
    %c0_84 = arith.constant 0 : index
    %c0_85 = arith.constant 0 : index
    %279 = vector.load %arg7[%c1_83, %c0_84, %c0_85] : memref<2x128x32xbf16, #tpu.memory_space<vmem>>, vector<1x128x32xbf16>
    %280 = vector.shape_cast %279 : vector<1x128x32xbf16> to vector<128x32xbf16>
    %cst_86 = arith.constant dense<0.000000e+00> : vector<16x32xf32>
    %281 = tpu.matmul %278, %280, %cst_86 {dimension_numbers = #tpu.dot_dimension_numbers<[1], [0], [0], [1], [0, 0, 1, 1], [], []>} : vector<16x128xbf16>, vector<128x32xbf16>, vector<16x32xf32> -> vector<16x32xf32>
    %c13 = arith.constant 13 : index
    %c0_87 = arith.constant 0 : index
    %282 = vector.load %arg9[%c13, %c0_87] : memref<17x128xf32, #tpu.memory_space<vmem>>, vector<1x32xf32>
    %283 = vector.broadcast %282 : vector<1x32xf32> to vector<16x32xf32>
    %284 = arith.addf %281, %283 : vector<16x32xf32>
    %285 = arith.addf %238, %284 : vector<16x32xf32>
    %c14 = arith.constant 14 : index
    %c0_88 = arith.constant 0 : index
    %286 = vector.load %arg9[%c14, %c0_88] : memref<17x128xf32, #tpu.memory_space<vmem>>, vector<1x32xf32>
    %c15 = arith.constant 15 : index
    %c0_89 = arith.constant 0 : index
    %287 = vector.load %arg9[%c15, %c0_89] : memref<17x128xf32, #tpu.memory_space<vmem>>, vector<1x32xf32>
    %cst_90 = arith.constant dense<0.000000e+00> : vector<16xf32>
    %288 = vector.multi_reduction <add>, %285, %cst_90 [1] : vector<16x32xf32> to vector<16xf32>
    %289 = vector.shape_cast %288 : vector<16xf32> to vector<16x1xf32>
    %cst_91 = arith.constant 3.200000e+01 : f32
    %290 = vector.broadcast %cst_91 : f32 to vector<16x1xf32>
    %291 = arith.divf %289, %290 : vector<16x1xf32>
    %292 = vector.broadcast %291 : vector<16x1xf32> to vector<16x32xf32>
    %293 = arith.subf %285, %292 : vector<16x32xf32>
    %294 = arith.mulf %293, %293 : vector<16x32xf32>
    %cst_92 = arith.constant dense<0.000000e+00> : vector<16xf32>
    %295 = vector.multi_reduction <add>, %294, %cst_92 [1] : vector<16x32xf32> to vector<16xf32>
    %296 = vector.shape_cast %295 : vector<16xf32> to vector<16x1xf32>
    %cst_93 = arith.constant 3.200000e+01 : f32
    %297 = vector.broadcast %cst_93 : f32 to vector<16x1xf32>
    %298 = arith.divf %296, %297 : vector<16x1xf32>
    %299 = vector.broadcast %291 : vector<16x1xf32> to vector<16x32xf32>
    %300 = arith.subf %285, %299 : vector<16x32xf32>
    %cst_94 = arith.constant 9.99999974E-6 : f32
    %301 = vector.broadcast %cst_94 : f32 to vector<16x1xf32>
    %302 = arith.addf %298, %301 : vector<16x1xf32>
    %303 = math.rsqrt %302 : vector<16x1xf32>
    %304 = vector.broadcast %303 : vector<16x1xf32> to vector<16x32xf32>
    %305 = arith.mulf %300, %304 : vector<16x32xf32>
    %306 = vector.broadcast %286 : vector<1x32xf32> to vector<16x32xf32>
    %307 = arith.mulf %305, %306 : vector<16x32xf32>
    %308 = vector.broadcast %287 : vector<1x32xf32> to vector<16x32xf32>
    %309 = arith.addf %307, %308 : vector<16x32xf32>
    %310 = arith.truncf %309 : vector<16x32xf32> to vector<16x32xbf16>
    %c0_95 = arith.constant 0 : index
    %c0_96 = arith.constant 0 : index
    %311 = vector.load %arg8[%c0_95, %c0_96] : memref<32x128xbf16, #tpu.memory_space<vmem>>, vector<32x128xbf16>
    %cst_97 = arith.constant dense<0.000000e+00> : vector<16x128xf32>
    %312 = tpu.matmul %310, %311, %cst_97 {dimension_numbers = #tpu.dot_dimension_numbers<[1], [0], [0], [1], [0, 0, 1, 1], [], []>} : vector<16x32xbf16>, vector<32x128xbf16>, vector<16x128xf32> -> vector<16x128xf32>
    %c16 = arith.constant 16 : index
    %c0_98 = arith.constant 0 : index
    %313 = vector.load %arg9[%c16, %c0_98] : memref<17x128xf32, #tpu.memory_space<vmem>>, vector<1x128xf32>
    %314 = vector.broadcast %313 : vector<1x128xf32> to vector<16x128xf32>
    %315 = arith.addf %312, %314 : vector<16x128xf32>
    %c0_99 = arith.constant 0 : index
    %c0_100 = arith.constant 0 : index
    %316 = vector.load %arg10[%c0_99, %c0_100] : memref<16x128xf32, #tpu.memory_space<vmem>>, vector<16x128xf32>
    tpu.vector_store %arg10[%c0_99, %c0_100], %315 {strides = array<i32>} : memref<16x128xf32, #tpu.memory_space<vmem>>, vector<16x128xf32>,
    return
  }
}

</mosaic_0001>

<llo_original>
// kernel: gpt_forward.1
$region0: #{gpt_forward.1}
  #allocation0 [shape = 'u32[]', space=smem, size = 0x4, offset = 0x4, fixed_abs, tag = 'smem constant byte address 0x4 - core index']
  #allocation1 [shape = 'u32[144,128]{1,0:T(1,128)}', space=vmem, size = 0x12000, scoped, tag = 'internal scratch']
  %s0 = inlined_call_operand.vmem [shape: s32[16,1], index: 0, kind: input, shape index: {}]
  %s1 = inlined_call_operand.vmem [shape: bf16[16,32], index: 1, kind: input, shape index: {}]
  %s2 = inlined_call_operand.vmem [shape: f32[16,32], index: 2, kind: input, shape index: {}]
  %s3 = inlined_call_operand.vmem [shape: f32[16,16], index: 3, kind: input, shape index: {}]
  %s4 = inlined_call_operand.vmem [shape: bf16[2,32,96], index: 4, kind: input, shape index: {}]
  %s5 = inlined_call_operand.vmem [shape: bf16[2,32,32], index: 5, kind: input, shape index: {}]
  %s6 = inlined_call_operand.vmem [shape: bf16[2,32,128], index: 6, kind: input, shape index: {}]
  %s7 = inlined_call_operand.vmem [shape: bf16[2,128,32], index: 7, kind: input, shape index: {}]
  %s8 = inlined_call_operand.vmem [shape: bf16[32,128], index: 8, kind: input, shape index: {}]
  %s9 = inlined_call_operand.vmem [shape: f32[17,128], index: 9, kind: input, shape index: {}]
  %s10 = inlined_call_operand.hbm [shape: f32[16,128], index: 10, kind: output, shape index: {}]
  %s11 = sld [smem:[#allocation0]]
  $region50: #{gpt_forward.1} parent=0
    _
  %s13 = ssub.s32 1, %s11
  %s14 = scalar_select 0, %s13, %s11
  $region1: #{gpt_forward.1} parent=0
    #allocation2 [shape = 'u8[8192]{0}', space=vmem, size = 0x2000, scoped, tag = 'output window, operand 0, single buffered']
    #allocation3 [shape = 's32[1]{0}', space=sflag, size = 0x4, scoped, tag = 'scoped memory for gpt_forward.1']
    %15 = vsyncpa [#allocation3], 0
    // Predicated region
    $region2: #{gpt_forward.1} parent=1 // pred_check
      _
    $region3: #{gpt_forward.1} parent=1 // pred_check_branch
      %17 = sbr.rel (0) target = $region5
    $region4: #{gpt_forward.1} parent=1 // pred_region
      _
    $region5: #{gpt_forward.1} parent=1 // pred_fallthru
      _
    // Predicated region
    $region6: #{gpt_forward.1} parent=1 // pred_check
      _
    $region7: #{gpt_forward.1} parent=1 // pred_check_branch
      %19 = sbr.rel (0) target = $region9
    $region8: #{gpt_forward.1} parent=1 // pred_region
      _
    $region9: #{gpt_forward.1} parent=1 // pred_fallthru
      _
    // Predicated region
    $region10: #{gpt_forward.1} parent=1 // pred_check
      _
    $region11: #{gpt_forward.1} parent=1 // pred_check_branch
      %21 = sbr.rel (0) target = $region13
    $region12: #{gpt_forward.1} parent=1 // pred_region
      _
    $region13: #{gpt_forward.1} parent=1 // pred_fallthru
      _
    // Predicated region
    $region14: #{gpt_forward.1} parent=1 // pred_check
      _
    $region15: #{gpt_forward.1} parent=1 // pred_check_branch
      %23 = sbr.rel (0) target = $region17
    $region16: #{gpt_forward.1} parent=1 // pred_region
      _
    $region17: #{gpt_forward.1} parent=1 // pred_fallthru
      _
    // Predicated region
    $region18: #{gpt_forward.1} parent=1 // pred_check
      _
    $region19: #{gpt_forward.1} parent=1 // pred_check_branch
      %25 = sbr.rel (0) target = $region21
    $region20: #{gpt_forward.1} parent=1 // pred_region
      _
    $region21: #{gpt_forward.1} parent=1 // pred_fallthru
      _
    // Predicated region
    $region22: #{gpt_forward.1} parent=1 // pred_check
      _
    $region23: #{gpt_forward.1} parent=1 // pred_check_branch
      %27 = sbr.rel (0) target = $region25
    $region24: #{gpt_forward.1} parent=1 // pred_region
      _
    $region25: #{gpt_forward.1} parent=1 // pred_fallthru
      _
    // Predicated region
    $region26: #{gpt_forward.1} parent=1 // pred_check
      _
    $region27: #{gpt_forward.1} parent=1 // pred_check_branch
      %29 = sbr.rel (0) target = $region29
    $region28: #{gpt_forward.1} parent=1 // pred_region
      _
    $region29: #{gpt_forward.1} parent=1 // pred_fallthru
      _
    // Predicated region
    $region30: #{gpt_forward.1} parent=1 // pred_check
      _
    $region31: #{gpt_forward.1} parent=1 // pred_check_branch
      %31 = sbr.rel (0) target = $region33
    $region32: #{gpt_forward.1} parent=1 // pred_region
      _
    $region33: #{gpt_forward.1} parent=1 // pred_fallthru
      _
    // Predicated region
    $region34: #{gpt_forward.1} parent=1 // pred_check
      _
    $region35: #{gpt_forward.1} parent=1 // pred_check_branch
      %33 = sbr.rel (0) target = $region37
    $region36: #{gpt_forward.1} parent=1 // pred_region
      _
    $region37: #{gpt_forward.1} parent=1 // pred_fallthru
      _
    // Predicated region
    $region38: #{gpt_forward.1} parent=1 // pred_check
      _
    $region39: #{gpt_forward.1} parent=1 // pred_check_branch
      %35 = sbr.rel (0) target = $region41
    $region40: #{gpt_forward.1} parent=1 // pred_region
      _
    $region41: #{gpt_forward.1} parent=1 // pred_fallthru
      _
    %v37 = vld [vmem:[%s0] sm:$0xff]
    %v38 = vld [vmem:[%s0 + $0x8] sm:$0xff]
    %v39 = vlaneseq
    %v40 = vand.u32 %v39, 127
    %41 = vset.pattern.permute.xlu0 0
    %42 = vperm.xlu0 %41, %v37
    %v43 = vpop.permute.xlu0 %42
    %44 = vset.pattern.permute.xlu0 0
    %45 = vperm.xlu0 %44, %v38
    %v46 = vpop.permute.xlu0 %45
    %vm47 = vcmp.eq.s32.totalorder %v40, %v43
    %vm48 = vcmp.eq.s32.totalorder %v40, %v46
    %v49 = vsel %vm47, 1, 0
    %v50 = vsel %vm48, 1, 0
    %v51 = vcvt.s32.f32 %v49
    %v52 = vcvt.s32.f32 %v50
    %v53 = vpack.c.bf16 %v52, %v51
    %v54 = vld [vmem:[%s1] sm:$0xf]
    %v55 = vld [vmem:[%s1 + $0x4] sm:$0xf]
    %v56 = vld [vmem:[%s2] sm:$0xff]
    %v57 = vld [vmem:[%s2 + $0x8] sm:$0xff]
    %v60 = vunpack.c.l.b16 %v54
    %v61 = vunpack.c.l.b16 %v55
    %v62 = vpack.c.b16 %v61, %v60
    %vm64 = vcmask 130048
    %v66 = vsel %vm64, %v53, 0
    %68 = vmatprep.subr.bf16.mxu0 0
    %69 = vmatpush1.bf16.msra.mxu0 %v62
    %70 = vmatprep.subr.bf16.mxu0 0
    %71 = vmatpush1.bf16.msra.mxu0 0
    %72 = vmatprep.subr.bf16.mxu0 0
    %73 = vmatpush1.bf16.msra.mxu0 0
    %74 = vmatprep.subr.bf16.mxu0 0
    %75 = vmatpush1.bf16.msra.mxu0 0
    %76 = vmatprep.subr.bf16.mxu0 0
    %77 = vmatpush1.bf16.msra.mxu0 0
    %78 = vmatprep.subr.bf16.mxu0 0
    %79 = vmatpush1.bf16.msra.mxu0 0
    %80 = vmatprep.subr.bf16.mxu0 0
    %81 = vmatpush1.bf16.msra.mxu0 0
    %82 = vmatprep.subr.bf16.mxu0 0
    %83 = vmatpush1.bf16.msra.mxu0 0
    %84 = vmatprep.subr.bf16.mxu0 0
    %85 = vmatpush1.bf16.msra.mxu0 0
    %86 = vmatprep.subr.bf16.mxu0 0
    %87 = vmatpush1.bf16.msra.mxu0 0
    %88 = vmatprep.subr.bf16.mxu0 0
    %89 = vmatpush1.bf16.msra.mxu0 0
    %90 = vmatprep.subr.bf16.mxu0 0
    %91 = vmatpush1.bf16.msra.mxu0 0
    %92 = vmatprep.subr.bf16.mxu0 0
    %93 = vmatpush1.bf16.msra.mxu0 0
    %94 = vmatprep.subr.bf16.mxu0 0
    %95 = vmatpush1.bf16.msra.mxu0 0
    %96 = vmatprep.subr.bf16.mxu0 0
    %97 = vmatpush1.bf16.msra.mxu0 0
    %98 = vmatprep.subr.bf16.mxu0 0
    %99 = vmatpush1.bf16.msra.mxu0 0
    %100 = vmatprep.mubr.bf16.mxu0 0
    %101 = vmatmul.mubr.bf16.gmra.mrb[0].mxu0 %v66
    %v102 = vpop.f32.mrb[0].mxu0
    %v103 = vadd.f32 %v56, %v102
    %v104 = vpop.f32.mrb[0].mxu0
    %v105 = vpop.f32.mrb[0].mxu0
    %v106 = vadd.f32 %v57, %v105
    %v107 = vpop.f32.mrb[0].mxu0
    %108 = vdwg.mxu0
    %v109 = vld [vmem:[%s3] sm:$0xff]
    %v110 = vld [vmem:[%s3 + $0x8] sm:$0xff]
    %v111 = vld [vmem:[%s9] sm:$0x1]
    %v112 = vld [vmem:[%s9 + $0x1] sm:$0x1]
    %vm113 = vcmask 261120
    %v114 = vsel %vm113, %v103, 0.0
    %115 = vadd.xlane.f32.xlu0 %v114
    %v116 = vpop.xlane.xlu0 %115
    %v117 = vsel %vm113, %v106, 0.0
    %118 = vadd.xlane.f32.xlu0 %v117
    %v119 = vpop.xlane.xlu0 %118
    %v120 = vrcp.pop 32.0
    %v121 = vmul.f32 %v116, %v120
    %v122 = vmul.f32 %v119, %v120
    %v123 = vsub.f32 %v103, %v121
    %v124 = vsub.f32 %v106, %v122
    %v125 = vmul.f32 %v123, %v123
    %v126 = vmul.f32 %v124, %v124
    %v127 = vsel %vm113, %v125, 0.0
    %128 = vadd.xlane.f32.xlu0 %v127
    %v129 = vpop.xlane.xlu0 %128
    %v130 = vsel %vm113, %v126, 0.0
    %131 = vadd.xlane.f32.xlu0 %v130
    %v132 = vpop.xlane.xlu0 %131
    %v133 = vmul.f32 %v129, %v120
    %v134 = vmul.f32 %v132, %v120
    %v135 = vadd.f32 %v133, 1e-05
    %v136 = vadd.f32 %v134, 1e-05
    %v137 = vrsqrt.pop %v135
    %v138 = vrsqrt.pop %v136
    %v139 = vmul.f32 %v123, %v137
    %v140 = vmul.f32 %v124, %v138
    %v141 = vlaneseq
    %v142 = vshrl.u32 %v141, 7
    %v143 = vsub.s32 0, %v142
    %v144 = vrot.slane %v111, %v143
    %v145 = vmul.f32 %v139, %v144
    %v146 = vmul.f32 %v140, %v144
    %v147 = vlaneseq
    %v148 = vshrl.u32 %v147, 7
    %v149 = vsub.s32 0, %v148
    %v150 = vrot.slane %v112, %v149
    %v151 = vadd.f32 %v145, %v150
    %v152 = vadd.f32 %v146, %v150
    %v153 = vpack.c.bf16 %v152, %v151
    %v154 = vld [vmem:[%s4] sm:$0xf]
    %v155 = vld [vmem:[%s4 + $0x4] sm:$0xf]
    %v156 = vld [vmem:[%s4 + $0x8] sm:$0xf]
    %v157 = vld [vmem:[%s4 + $0xc] sm:$0xf]
    %v162 = vunpack.c.l.b16 %v154
    %v163 = vunpack.c.l.b16 %v155
    %v164 = vunpack.c.l.b16 %v156
    %v165 = vunpack.c.l.b16 %v157
    %v166 = vpack.c.b16 %v163, %v162
    %v167 = vpack.c.b16 %v165, %v164
    %v171 = vsel %vm113, %v153, 0
    %173 = vmatprep.subr.bf16.mxu0 0
    %174 = vmatpush1.bf16.msra.mxu0 %v166
    %175 = vmatprep.subr.bf16.mxu0 0
    %176 = vmatpush1.bf16.msra.mxu0 %v167
    %177 = vmatprep.subr.bf16.mxu0 0
    %178 = vmatpush1.bf16.msra.mxu0 0
    %179 = vmatprep.subr.bf16.mxu0 0
    %180 = vmatpush1.bf16.msra.mxu0 0
    %181 = vmatprep.subr.bf16.mxu0 0
    %182 = vmatpush1.bf16.msra.mxu0 0
    %183 = vmatprep.subr.bf16.mxu0 0
    %184 = vmatpush1.bf16.msra.mxu0 0
    %185 = vmatprep.subr.bf16.mxu0 0
    %186 = vmatpush1.bf16.msra.mxu0 0
    %187 = vmatprep.subr.bf16.mxu0 0
    %188 = vmatpush1.bf16.msra.mxu0 0
    %189 = vmatprep.subr.bf16.mxu0 0
    %190 = vmatpush1.bf16.msra.mxu0 0
    %191 = vmatprep.subr.bf16.mxu0 0
    %192 = vmatpush1.bf16.msra.mxu0 0
    %193 = vmatprep.subr.bf16.mxu0 0
    %194 = vmatpush1.bf16.msra.mxu0 0
    %195 = vmatprep.subr.bf16.mxu0 0
    %196 = vmatpush1.bf16.msra.mxu0 0
    %197 = vmatprep.subr.bf16.mxu0 0
    %198 = vmatpush1.bf16.msra.mxu0 0
    %199 = vmatprep.subr.bf16.mxu0 0
    %200 = vmatpush1.bf16.msra.mxu0 0
    %201 = vmatprep.subr.bf16.mxu0 0
    %202 = vmatpush1.bf16.msra.mxu0 0
    %203 = vmatprep.subr.bf16.mxu0 0
    %204 = vmatpush1.bf16.msra.mxu0 0
    %205 = vmatprep.mubr.bf16.mxu0 0
    %206 = vmatmul.mubr.bf16.gmra.mrb[0].mxu0 %v171
    %v207 = vpop.f32.mrb[0].mxu0
    %v208 = vadd.f32 0.0, %v207
    %v209 = vpop.f32.mrb[0].mxu0
    %v210 = vpop.f32.mrb[0].mxu0
    %v211 = vadd.f32 0.0, %v210
    %v212 = vpop.f32.mrb[0].mxu0
    %213 = vdwg.mxu0
    %216 = vrot.lane.b32.xlu0 %v208, 120
    %v217 = vpop.permute.xlu0 %216
    %218 = vrot.lane.b32.xlu0 %v211, 120
    %v219 = vpop.permute.xlu0 %218
    %222 = vrot.lane.b32.xlu0 %v208, 112
    %v223 = vpop.permute.xlu0 %222
    %224 = vrot.lane.b32.xlu0 %v211, 112
    %v225 = vpop.permute.xlu0 %224
    %228 = vrot.lane.b32.xlu0 %v208, 104
    %v229 = vpop.permute.xlu0 %228
    %230 = vrot.lane.b32.xlu0 %v211, 104
    %v231 = vpop.permute.xlu0 %230
    %v234 = vpack.c.bf16 %v211, %v208
    %v235 = vpack.c.bf16 %v219, %v217
    %v236 = vpack.c.bf16 %v225, %v223
    %v237 = vpack.c.bf16 %v231, %v229
    %239 = vrot.lane.b32.xlu0 %v234, 96
    %v240 = vpop.permute.xlu0 %239
    %vm241 = vcmask 64512
    %v243 = vsel %vm241, %v234, 0
    %v246 = vsel %vm241, %v240, 0
    %248 = vmatprep.subr.bf16.mxu0 0
    %249 = vmatpush1.bf16.xpose.msra.mxu0 %v246
    %250 = vmatprep.subr.bf16.mxu0 0
    %251 = vmatpush1.bf16.xpose.msra.mxu0 0
    %252 = vmatprep.subr.bf16.mxu0 0
    %253 = vmatpush1.bf16.xpose.msra.mxu0 0
    %254 = vmatprep.subr.bf16.mxu0 0
    %255 = vmatpush1.bf16.xpose.msra.mxu0 0
    %256 = vmatprep.subr.bf16.mxu0 0
    %257 = vmatpush1.bf16.xpose.msra.mxu0 0
    %258 = vmatprep.subr.bf16.mxu0 0
    %259 = vmatpush1.bf16.xpose.msra.mxu0 0
    %260 = vmatprep.subr.bf16.mxu0 0
    %261 = vmatpush1.bf16.xpose.msra.mxu0 0
    %262 = vmatprep.subr.bf16.mxu0 0
    %263 = vmatpush1.bf16.xpose.msra.mxu0 0
    %264 = vmatprep.subr.bf16.mxu0 0
    %265 = vmatpush1.bf16.xpose.msra.mxu0 0
    %266 = vmatprep.subr.bf16.mxu0 0
    %267 = vmatpush1.bf16.xpose.msra.mxu0 0
    %268 = vmatprep.subr.bf16.mxu0 0
    %269 = vmatpush1.bf16.xpose.msra.mxu0 0
    %270 = vmatprep.subr.bf16.mxu0 0
    %271 = vmatpush1.bf16.xpose.msra.mxu0 0
    %272 = vmatprep.subr.bf16.mxu0 0
    %273 = vmatpush1.bf16.xpose.msra.mxu0 0
    %274 = vmatprep.subr.bf16.mxu0 0
    %275 = vmatpush1.bf16.xpose.msra.mxu0 0
    %276 = vmatprep.subr.bf16.mxu0 0
    %277 = vmatpush1.bf16.xpose.msra.mxu0 0
    %278 = vmatprep.subr.bf16.mxu0 0
    %279 = vmatpush1.bf16.xpose.msra.mxu0 0
    %280 = vmatprep.mubr.bf16.mxu0 0
    %281 = vmatmul.mubr.bf16.gmra.mrb[0].mxu0 %v243
    %v282 = vpop.f32.mrb[0].mxu0
    %v283 = vadd.f32 %v109, %v282
    %v284 = vpop.f32.mrb[0].mxu0
    %v285 = vpop.f32.mrb[0].mxu0
    %v286 = vadd.f32 %v110, %v285
    %v287 = vpop.f32.mrb[0].mxu0
    %288 = vdwg.mxu0
    %290 = vrot.lane.b32.xlu0 %v235, 96
    %v291 = vpop.permute.xlu0 %290
    %v293 = vsel %vm241, %v235, 0
    %v296 = vsel %vm241, %v291, 0
    %298 = vmatprep.subr.bf16.mxu0 0
    %299 = vmatpush1.bf16.xpose.msra.mxu0 %v296
    %300 = vmatprep.subr.bf16.mxu0 0
    %301 = vmatpush1.bf16.xpose.msra.mxu0 0
    %302 = vmatprep.subr.bf16.mxu0 0
    %303 = vmatpush1.bf16.xpose.msra.mxu0 0
    %304 = vmatprep.subr.bf16.mxu0 0
    %305 = vmatpush1.bf16.xpose.msra.mxu0 0
    %306 = vmatprep.subr.bf16.mxu0 0
    %307 = vmatpush1.bf16.xpose.msra.mxu0 0
    %308 = vmatprep.subr.bf16.mxu0 0
    %309 = vmatpush1.bf16.xpose.msra.mxu0 0
    %310 = vmatprep.subr.bf16.mxu0 0
    %311 = vmatpush1.bf16.xpose.msra.mxu0 0
    %312 = vmatprep.subr.bf16.mxu0 0
    %313 = vmatpush1.bf16.xpose.msra.mxu0 0
    %314 = vmatprep.subr.bf16.mxu0 0
    %315 = vmatpush1.bf16.xpose.msra.mxu0 0
    %316 = vmatprep.subr.bf16.mxu0 0
    %317 = vmatpush1.bf16.xpose.msra.mxu0 0
    %318 = vmatprep.subr.bf16.mxu0 0
    %319 = vmatpush1.bf16.xpose.msra.mxu0 0
    %320 = vmatprep.subr.bf16.mxu0 0
    %321 = vmatpush1.bf16.xpose.msra.mxu0 0
    %322 = vmatprep.subr.bf16.mxu0 0
    %323 = vmatpush1.bf16.xpose.msra.mxu0 0
    %324 = vmatprep.subr.bf16.mxu0 0
    %325 = vmatpush1.bf16.xpose.msra.mxu0 0
    %326 = vmatprep.subr.bf16.mxu0 0
    %327 = vmatpush1.bf16.xpose.msra.mxu0 0
    %328 = vmatprep.subr.bf16.mxu0 0
    %329 = vmatpush1.bf16.xpose.msra.mxu0 0
    %330 = vmatprep.mubr.bf16.mxu0 0
    %331 = vmatmul.mubr.bf16.gmra.mrb[0].mxu0 %v293
    %v332 = vpop.f32.mrb[0].mxu0
    %v333 = vadd.f32 %v109, %v332
    %v334 = vpop.f32.mrb[0].mxu0
    %v335 = vpop.f32.mrb[0].mxu0
    %v336 = vadd.f32 %v110, %v335
    %v337 = vpop.f32.mrb[0].mxu0
    %338 = vdwg.mxu0
    %340 = vrot.lane.b32.xlu0 %v236, 96
    %v341 = vpop.permute.xlu0 %340
    %v343 = vsel %vm241, %v236, 0
    %v346 = vsel %vm241, %v341, 0
    %348 = vmatprep.subr.bf16.mxu0 0
    %349 = vmatpush1.bf16.xpose.msra.mxu0 %v346
    %350 = vmatprep.subr.bf16.mxu0 0
    %351 = vmatpush1.bf16.xpose.msra.mxu0 0
    %352 = vmatprep.subr.bf16.mxu0 0
    %353 = vmatpush1.bf16.xpose.msra.mxu0 0
    %354 = vmatprep.subr.bf16.mxu0 0
    %355 = vmatpush1.bf16.xpose.msra.mxu0 0
    %356 = vmatprep.subr.bf16.mxu0 0
    %357 = vmatpush1.bf16.xpose.msra.mxu0 0
    %358 = vmatprep.subr.bf16.mxu0 0
    %359 = vmatpush1.bf16.xpose.msra.mxu0 0
    %360 = vmatprep.subr.bf16.mxu0 0
    %361 = vmatpush1.bf16.xpose.msra.mxu0 0
    %362 = vmatprep.subr.bf16.mxu0 0
    %363 = vmatpush1.bf16.xpose.msra.mxu0 0
    %364 = vmatprep.subr.bf16.mxu0 0
    %365 = vmatpush1.bf16.xpose.msra.mxu0 0
    %366 = vmatprep.subr.bf16.mxu0 0
    %367 = vmatpush1.bf16.xpose.msra.mxu0 0
    %368 = vmatprep.subr.bf16.mxu0 0
    %369 = vmatpush1.bf16.xpose.msra.mxu0 0
    %370 = vmatprep.subr.bf16.mxu0 0
    %371 = vmatpush1.bf16.xpose.msra.mxu0 0
    %372 = vmatprep.subr.bf16.mxu0 0
    %373 = vmatpush1.bf16.xpose.msra.mxu0 0
    %374 = vmatprep.subr.bf16.mxu0 0
    %375 = vmatpush1.bf16.xpose.msra.mxu0 0
    %376 = vmatprep.subr.bf16.mxu0 0
    %377 = vmatpush1.bf16.xpose.msra.mxu0 0
    %378 = vmatprep.subr.bf16.mxu0 0
    %379 = vmatpush1.bf16.xpose.msra.mxu0 0
    %380 = vmatprep.mubr.bf16.mxu0 0
    %381 = vmatmul.mubr.bf16.gmra.mrb[0].mxu0 %v343
    %v382 = vpop.f32.mrb[0].mxu0
    %v383 = vadd.f32 %v109, %v382
    %v384 = vpop.f32.mrb[0].mxu0
    %v385 = vpop.f32.mrb[0].mxu0
    %v386 = vadd.f32 %v110, %v385
    %v387 = vpop.f32.mrb[0].mxu0
    %388 = vdwg.mxu0
    %390 = vrot.lane.b32.xlu0 %v237, 96
    %v391 = vpop.permute.xlu0 %390
    %v393 = vsel %vm241, %v237, 0
    %v396 = vsel %vm241, %v391, 0
    %398 = vmatprep.subr.bf16.mxu0 0
    %399 = vmatpush1.bf16.xpose.msra.mxu0 %v396
    %400 = vmatprep.subr.bf16.mxu0 0
    %401 = vmatpush1.bf16.xpose.msra.mxu0 0
    %402 = vmatprep.subr.bf16.mxu0 0
    %403 = vmatpush1.bf16.xpose.msra.mxu0 0
    %404 = vmatprep.subr.bf16.mxu0 0
    %405 = vmatpush1.bf16.xpose.msra.mxu0 0
    %406 = vmatprep.subr.bf16.mxu0 0
    %407 = vmatpush1.bf16.xpose.msra.mxu0 0
    %408 = vmatprep.subr.bf16.mxu0 0
    %409 = vmatpush1.bf16.xpose.msra.mxu0 0
    %410 = vmatprep.subr.bf16.mxu0 0
    %411 = vmatpush1.bf16.xpose.msra.mxu0 0
    %412 = vmatprep.subr.bf16.mxu0 0
    %413 = vmatpush1.bf16.xpose.msra.mxu0 0
    %414 = vmatprep.subr.bf16.mxu0 0
    %415 = vmatpush1.bf16.xpose.msra.mxu0 0
    %416 = vmatprep.subr.bf16.mxu0 0
    %417 = vmatpush1.bf16.xpose.msra.mxu0 0
    %418 = vmatprep.subr.bf16.mxu0 0
    %419 = vmatpush1.bf16.xpose.msra.mxu0 0
    %420 = vmatprep.subr.bf16.mxu0 0
    %421 = vmatpush1.bf16.xpose.msra.mxu0 0
    %422 = vmatprep.subr.bf16.mxu0 0
    %423 = vmatpush1.bf16.xpose.msra.mxu0 0
    %424 = vmatprep.subr.bf16.mxu0 0
    %425 = vmatpush1.bf16.xpose.msra.mxu0 0
    %426 = vmatprep.subr.bf16.mxu0 0
    %427 = vmatpush1.bf16.xpose.msra.mxu0 0
    %428 = vmatprep.subr.bf16.mxu0 0
    %429 = vmatpush1.bf16.xpose.msra.mxu0 0
    %430 = vmatprep.mubr.bf16.mxu0 0
    %431 = vmatmul.mubr.bf16.gmra.mrb[0].mxu0 %v393
    %v432 = vpop.f32.mrb[0].mxu0
    %v433 = vadd.f32 %v109, %v432
    %v434 = vpop.f32.mrb[0].mxu0
    %v435 = vpop.f32.mrb[0].mxu0
    %v436 = vadd.f32 %v110, %v435
    %v437 = vpop.f32.mrb[0].mxu0
    %438 = vdwg.mxu0
    %v439 = vsel %vm64, %v283, -inf
    %440 = vmax.xlane.f32.xlu0 %v439
    %v441 = vpop.xlane.xlu0 %440
    %v442 = vsel %vm64, %v286, -inf
    %443 = vmax.xlane.f32.xlu0 %v442
    %v444 = vpop.xlane.xlu0 %443
    %v445 = vsel %vm64, %v333, -inf
    %446 = vmax.xlane.f32.xlu0 %v445
    %v447 = vpop.xlane.xlu0 %446
    %v448 = vsel %vm64, %v336, -inf
    %449 = vmax.xlane.f32.xlu0 %v448
    %v450 = vpop.xlane.xlu0 %449
    %v451 = vsel %vm64, %v383, -inf
    %452 = vmax.xlane.f32.xlu0 %v451
    %v453 = vpop.xlane.xlu0 %452
    %v454 = vsel %vm64, %v386, -inf
    %455 = vmax.xlane.f32.xlu0 %v454
    %v456 = vpop.xlane.xlu0 %455
    %v457 = vsel %vm64, %v433, -inf
    %458 = vmax.xlane.f32.xlu0 %v457
    %v459 = vpop.xlane.xlu0 %458
    %v460 = vsel %vm64, %v436, -inf
    %461 = vmax.xlane.f32.xlu0 %v460
    %v462 = vpop.xlane.xlu0 %461
    %v463 = vsub.f32 %v283, %v441
    %v464 = vsub.f32 %v286, %v444
    %v465 = vsub.f32 %v333, %v447
    %v466 = vsub.f32 %v336, %v450
    %v467 = vsub.f32 %v383, %v453
    %v468 = vsub.f32 %v386, %v456
    %v469 = vsub.f32 %v433, %v459
    %v470 = vsub.f32 %v436, %v462
    %v471 = vmul.f32 %v463, 1.442695
    %v472 = vpow.pop %v471
    %v473 = vmul.f32 %v464, 1.442695
    %v474 = vpow.pop %v473
    %v475 = vmul.f32 %v465, 1.442695
    %v476 = vpow.pop %v475
    %v477 = vmul.f32 %v466, 1.442695
    %v478 = vpow.pop %v477
    %v479 = vmul.f32 %v467, 1.442695
    %v480 = vpow.pop %v479
    %v481 = vmul.f32 %v468, 1.442695
    %v482 = vpow.pop %v481
    %v483 = vmul.f32 %v469, 1.442695
    %v484 = vpow.pop %v483
    %v485 = vmul.f32 %v470, 1.442695
    %v486 = vpow.pop %v485
    %v487 = vsel %vm64, %v472, 0.0
    %488 = vadd.xlane.f32.xlu0 %v487
    %v489 = vpop.xlane.xlu0 %488
    %v490 = vsel %vm64, %v474, 0.0
    %491 = vadd.xlane.f32.xlu0 %v490
    %v492 = vpop.xlane.xlu0 %491
    %v493 = vsel %vm64, %v476, 0.0
    %494 = vadd.xlane.f32.xlu0 %v493
    %v495 = vpop.xlane.xlu0 %494
    %v496 = vsel %vm64, %v478, 0.0
    %497 = vadd.xlane.f32.xlu0 %v496
    %v498 = vpop.xlane.xlu0 %497
    %v499 = vsel %vm64, %v480, 0.0
    %500 = vadd.xlane.f32.xlu0 %v499
    %v501 = vpop.xlane.xlu0 %500
    %v502 = vsel %vm64, %v482, 0.0
    %503 = vadd.xlane.f32.xlu0 %v502
    %v504 = vpop.xlane.xlu0 %503
    %v505 = vsel %vm64, %v484, 0.0
    %506 = vadd.xlane.f32.xlu0 %v505
    %v507 = vpop.xlane.xlu0 %506
    %v508 = vsel %vm64, %v486, 0.0
    %509 = vadd.xlane.f32.xlu0 %v508
    %v510 = vpop.xlane.xlu0 %509
    %v511 = vrcp.pop %v489
    %v512 = vmul.f32 %v472, %v511
    %v513 = vrcp.pop %v492
    %v514 = vmul.f32 %v474, %v513
    %v515 = vrcp.pop %v495
    %v516 = vmul.f32 %v476, %v515
    %v517 = vrcp.pop %v498
    %v518 = vmul.f32 %v478, %v517
    %v519 = vrcp.pop %v501
    %v520 = vmul.f32 %v480, %v519
    %v521 = vrcp.pop %v504
    %v522 = vmul.f32 %v482, %v521
    %v523 = vrcp.pop %v507
    %v524 = vmul.f32 %v484, %v523
    %v525 = vrcp.pop %v510
    %v526 = vmul.f32 %v486, %v525
    %v527 = vpack.c.bf16 %v514, %v512
    %v528 = vpack.c.bf16 %v518, %v516
    %v529 = vpack.c.bf16 %v522, %v520
    %v530 = vpack.c.bf16 %v526, %v524
    %531 = vrot.lane.b32.xlu0 %v234, 64
    %v532 = vpop.permute.xlu0 %531
    %v535 = vsel %vm64, %v527, 0
    %537 = vmatprep.subr.bf16.mxu0 0
    %538 = vmatpush1.bf16.msra.mxu0 %v532
    %539 = vmatprep.subr.bf16.mxu0 0
    %540 = vmatpush1.bf16.msra.mxu0 0
    %541 = vmatprep.subr.bf16.mxu0 0
    %542 = vmatpush1.bf16.msra.mxu0 0
    %543 = vmatprep.subr.bf16.mxu0 0
    %544 = vmatpush1.bf16.msra.mxu0 0
    %545 = vmatprep.subr.bf16.mxu0 0
    %546 = vmatpush1.bf16.msra.mxu0 0
    %547 = vmatprep.subr.bf16.mxu0 0
    %548 = vmatpush1.bf16.msra.mxu0 0
    %549 = vmatprep.subr.bf16.mxu0 0
    %550 = vmatpush1.bf16.msra.mxu0 0
    %551 = vmatprep.subr.bf16.mxu0 0
    %552 = vmatpush1.bf16.msra.mxu0 0
    %553 = vmatprep.subr.bf16.mxu0 0
    %554 = vmatpush1.bf16.msra.mxu0 0
    %555 = vmatprep.subr.bf16.mxu0 0
    %556 = vmatpush1.bf16.msra.mxu0 0
    %557 = vmatprep.subr.bf16.mxu0 0
    %558 = vmatpush1.bf16.msra.mxu0 0
    %559 = vmatprep.subr.bf16.mxu0 0
    %560 = vmatpush1.bf16.msra.mxu0 0
    %561 = vmatprep.subr.bf16.mxu0 0
    %562 = vmatpush1.bf16.msra.mxu0 0
    %563 = vmatprep.subr.bf16.mxu0 0
    %564 = vmatpush1.bf16.msra.mxu0 0
    %565 = vmatprep.subr.bf16.mxu0 0
    %566 = vmatpush1.bf16.msra.mxu0 0
    %567 = vmatprep.subr.bf16.mxu0 0
    %568 = vmatpush1.bf16.msra.mxu0 0
    %569 = vmatprep.mubr.bf16.mxu0 0
    %570 = vmatmul.mubr.bf16.gmra.mrb[0].mxu0 %v535
    %v571 = vpop.f32.mrb[0].mxu0
    %v572 = vadd.f32 0.0, %v571
    %v573 = vpop.f32.mrb[0].mxu0
    %v574 = vpop.f32.mrb[0].mxu0
    %v575 = vadd.f32 0.0, %v574
    %v576 = vpop.f32.mrb[0].mxu0
    %577 = vdwg.mxu0
    %578 = vrot.lane.b32.xlu0 %v235, 64
    %v579 = vpop.permute.xlu0 %578
    %v582 = vsel %vm64, %v528, 0
    %584 = vmatprep.subr.bf16.mxu0 0
    %585 = vmatpush1.bf16.msra.mxu0 %v579
    %586 = vmatprep.subr.bf16.mxu0 0
    %587 = vmatpush1.bf16.msra.mxu0 0
    %588 = vmatprep.subr.bf16.mxu0 0
    %589 = vmatpush1.bf16.msra.mxu0 0
    %590 = vmatprep.subr.bf16.mxu0 0
    %591 = vmatpush1.bf16.msra.mxu0 0
    %592 = vmatprep.subr.bf16.mxu0 0
    %593 = vmatpush1.bf16.msra.mxu0 0
    %594 = vmatprep.subr.bf16.mxu0 0
    %595 = vmatpush1.bf16.msra.mxu0 0
    %596 = vmatprep.subr.bf16.mxu0 0
    %597 = vmatpush1.bf16.msra.mxu0 0
    %598 = vmatprep.subr.bf16.mxu0 0
    %599 = vmatpush1.bf16.msra.mxu0 0
    %600 = vmatprep.subr.bf16.mxu0 0
    %601 = vmatpush1.bf16.msra.mxu0 0
    %602 = vmatprep.subr.bf16.mxu0 0
    %603 = vmatpush1.bf16.msra.mxu0 0
    %604 = vmatprep.subr.bf16.mxu0 0
    %605 = vmatpush1.bf16.msra.mxu0 0
    %606 = vmatprep.subr.bf16.mxu0 0
    %607 = vmatpush1.bf16.msra.mxu0 0
    %608 = vmatprep.subr.bf16.mxu0 0
    %609 = vmatpush1.bf16.msra.mxu0 0
    %610 = vmatprep.subr.bf16.mxu0 0
    %611 = vmatpush1.bf16.msra.mxu0 0
    %612 = vmatprep.subr.bf16.mxu0 0
    %613 = vmatpush1.bf16.msra.mxu0 0
    %614 = vmatprep.subr.bf16.mxu0 0
    %615 = vmatpush1.bf16.msra.mxu0 0
    %616 = vmatprep.mubr.bf16.mxu0 0
    %617 = vmatmul.mubr.bf16.gmra.mrb[0].mxu0 %v582
    %v618 = vpop.f32.mrb[0].mxu0
    %v619 = vadd.f32 0.0, %v618
    %v620 = vpop.f32.mrb[0].mxu0
    %v621 = vpop.f32.mrb[0].mxu0
    %v622 = vadd.f32 0.0, %v621
    %v623 = vpop.f32.mrb[0].mxu0
    %624 = vdwg.mxu0
    %625 = vrot.lane.b32.xlu0 %v236, 64
    %v626 = vpop.permute.xlu0 %625
    %v629 = vsel %vm64, %v529, 0
    %631 = vmatprep.subr.bf16.mxu0 0
    %632 = vmatpush1.bf16.msra.mxu0 %v626
    %633 = vmatprep.subr.bf16.mxu0 0
    %634 = vmatpush1.bf16.msra.mxu0 0
    %635 = vmatprep.subr.bf16.mxu0 0
    %636 = vmatpush1.bf16.msra.mxu0 0
    %637 = vmatprep.subr.bf16.mxu0 0
    %638 = vmatpush1.bf16.msra.mxu0 0
    %639 = vmatprep.subr.bf16.mxu0 0
    %640 = vmatpush1.bf16.msra.mxu0 0
    %641 = vmatprep.subr.bf16.mxu0 0
    %642 = vmatpush1.bf16.msra.mxu0 0
    %643 = vmatprep.subr.bf16.mxu0 0
    %644 = vmatpush1.bf16.msra.mxu0 0
    %645 = vmatprep.subr.bf16.mxu0 0
    %646 = vmatpush1.bf16.msra.mxu0 0
    %647 = vmatprep.subr.bf16.mxu0 0
    %648 = vmatpush1.bf16.msra.mxu0 0
    %649 = vmatprep.subr.bf16.mxu0 0
    %650 = vmatpush1.bf16.msra.mxu0 0
    %651 = vmatprep.subr.bf16.mxu0 0
    %652 = vmatpush1.bf16.msra.mxu0 0
    %653 = vmatprep.subr.bf16.mxu0 0
    %654 = vmatpush1.bf16.msra.mxu0 0
    %655 = vmatprep.subr.bf16.mxu0 0
    %656 = vmatpush1.bf16.msra.mxu0 0
    %657 = vmatprep.subr.bf16.mxu0 0
    %658 = vmatpush1.bf16.msra.mxu0 0
    %659 = vmatprep.subr.bf16.mxu0 0
    %660 = vmatpush1.bf16.msra.mxu0 0
    %661 = vmatprep.subr.bf16.mxu0 0
    %662 = vmatpush1.bf16.msra.mxu0 0
    %663 = vmatprep.mubr.bf16.mxu0 0
    %664 = vmatmul.mubr.bf16.gmra.mrb[0].mxu0 %v629
    %v665 = vpop.f32.mrb[0].mxu0
    %v666 = vadd.f32 0.0, %v665
    %v667 = vpop.f32.mrb[0].mxu0
    %v668 = vpop.f32.mrb[0].mxu0
    %v669 = vadd.f32 0.0, %v668
    %v670 = vpop.f32.mrb[0].mxu0
    %671 = vdwg.mxu0
    %672 = vrot.lane.b32.xlu0 %v237, 64
    %v673 = vpop.permute.xlu0 %672
    %v676 = vsel %vm64, %v530, 0
    %678 = vmatprep.subr.bf16.mxu0 0
    %679 = vmatpush1.bf16.msra.mxu0 %v673
    %680 = vmatprep.subr.bf16.mxu0 0
    %681 = vmatpush1.bf16.msra.mxu0 0
    %682 = vmatprep.subr.bf16.mxu0 0
    %683 = vmatpush1.bf16.msra.mxu0 0
    %684 = vmatprep.subr.bf16.mxu0 0
    %685 = vmatpush1.bf16.msra.mxu0 0
    %686 = vmatprep.subr.bf16.mxu0 0
    %687 = vmatpush1.bf16.msra.mxu0 0
    %688 = vmatprep.subr.bf16.mxu0 0
    %689 = vmatpush1.bf16.msra.mxu0 0
    %690 = vmatprep.subr.bf16.mxu0 0
    %691 = vmatpush1.bf16.msra.mxu0 0
    %692 = vmatprep.subr.bf16.mxu0 0
    %693 = vmatpush1.bf16.msra.mxu0 0
    %694 = vmatprep.subr.bf16.mxu0 0
    %695 = vmatpush1.bf16.msra.mxu0 0
    %696 = vmatprep.subr.bf16.mxu0 0
    %697 = vmatpush1.bf16.msra.mxu0 0
    %698 = vmatprep.subr.bf16.mxu0 0
    %699 = vmatpush1.bf16.msra.mxu0 0
    %700 = vmatprep.subr.bf16.mxu0 0
    %701 = vmatpush1.bf16.msra.mxu0 0
    %702 = vmatprep.subr.bf16.mxu0 0
    %703 = vmatpush1.bf16.msra.mxu0 0
    %704 = vmatprep.subr.bf16.mxu0 0
    %705 = vmatpush1.bf16.msra.mxu0 0
    %706 = vmatprep.subr.bf16.mxu0 0
    %707 = vmatpush1.bf16.msra.mxu0 0
    %708 = vmatprep.subr.bf16.mxu0 0
    %709 = vmatpush1.bf16.msra.mxu0 0
    %710 = vmatprep.mubr.bf16.mxu0 0
    %711 = vmatmul.mubr.bf16.gmra.mrb[0].mxu0 %v676
    %v712 = vpop.f32.mrb[0].mxu0
    %v713 = vadd.f32 0.0, %v712
    %v714 = vpop.f32.mrb[0].mxu0
    %v715 = vpop.f32.mrb[0].mxu0
    %v716 = vadd.f32 0.0, %v715
    %v717 = vpop.f32.mrb[0].mxu0
    %718 = vdwg.mxu0
    %721 = vrot.lane.b32.xlu0 %v619, 8
    %v722 = vpop.permute.xlu0 %721
    %723 = vrot.lane.b32.xlu0 %v622, 8
    %v724 = vpop.permute.xlu0 %723
    %729 = vrot.lane.b32.xlu0 %v666, 16
    %v730 = vpop.permute.xlu0 %729
    %731 = vrot.lane.b32.xlu0 %v669, 16
    %v732 = vpop.permute.xlu0 %731
    %737 = vrot.lane.b32.xlu0 %v713, 24
    %v738 = vpop.permute.xlu0 %737
    %739 = vrot.lane.b32.xlu0 %v716, 24
    %v740 = vpop.permute.xlu0 %739
    %v743 = vsel %vm241, %v572, %v722
    %v744 = vsel %vm241, %v575, %v724
    %v745 = vsel %vm64, %v743, %v730
    %v746 = vsel %vm64, %v744, %v732
    %vm747 = vcmask 195584
    %v748 = vsel %vm747, %v745, %v738
    %v749 = vsel %vm747, %v746, %v740
    %v750 = vpack.c.bf16 %v749, %v748
    %v751 = vld [vmem:[%s5] sm:$0xf]
    %v752 = vld [vmem:[%s5 + $0x4] sm:$0xf]
    %v753 = vld [vmem:[%s5 + $0x8] sm:$0xf]
    %v754 = vld [vmem:[%s5 + $0xc] sm:$0xf]
    %v759 = vunpack.c.l.b16 %v751
    %v760 = vunpack.c.l.b16 %v752
    %v761 = vunpack.c.l.b16 %v753
    %v762 = vunpack.c.l.b16 %v754
    %v763 = vpack.c.b16 %v760, %v759
    %v764 = vpack.c.b16 %v762, %v761
    %v768 = vsel %vm113, %v750, 0
    %770 = vmatprep.subr.bf16.mxu0 0
    %771 = vmatpush1.bf16.msra.mxu0 %v763
    %772 = vmatprep.subr.bf16.mxu0 0
    %773 = vmatpush1.bf16.msra.mxu0 %v764
    %774 = vmatprep.subr.bf16.mxu0 0
    %775 = vmatpush1.bf16.msra.mxu0 0
    %776 = vmatprep.subr.bf16.mxu0 0
    %777 = vmatpush1.bf16.msra.mxu0 0
    %778 = vmatprep.subr.bf16.mxu0 0
    %779 = vmatpush1.bf16.msra.mxu0 0
    %780 = vmatprep.subr.bf16.mxu0 0
    %781 = vmatpush1.bf16.msra.mxu0 0
    %782 = vmatprep.subr.bf16.mxu0 0
    %783 = vmatpush1.bf16.msra.mxu0 0
    %784 = vmatprep.subr.bf16.mxu0 0
    %785 = vmatpush1.bf16.msra.mxu0 0
    %786 = vmatprep.subr.bf16.mxu0 0
    %787 = vmatpush1.bf16.msra.mxu0 0
    %788 = vmatprep.subr.bf16.mxu0 0
    %789 = vmatpush1.bf16.msra.mxu0 0
    %790 = vmatprep.subr.bf16.mxu0 0
    %791 = vmatpush1.bf16.msra.mxu0 0
    %792 = vmatprep.subr.bf16.mxu0 0
    %793 = vmatpush1.bf16.msra.mxu0 0
    %794 = vmatprep.subr.bf16.mxu0 0
    %795 = vmatpush1.bf16.msra.mxu0 0
    %796 = vmatprep.subr.bf16.mxu0 0
    %797 = vmatpush1.bf16.msra.mxu0 0
    %798 = vmatprep.subr.bf16.mxu0 0
    %799 = vmatpush1.bf16.msra.mxu0 0
    %800 = vmatprep.subr.bf16.mxu0 0
    %801 = vmatpush1.bf16.msra.mxu0 0
    %802 = vmatprep.mubr.bf16.mxu0 0
    %803 = vmatmul.mubr.bf16.gmra.mrb[0].mxu0 %v768
    %v804 = vpop.f32.mrb[0].mxu0
    %v805 = vadd.f32 0.0, %v804
    %v806 = vpop.f32.mrb[0].mxu0
    %v807 = vpop.f32.mrb[0].mxu0
    %v808 = vadd.f32 0.0, %v807
    %v809 = vpop.f32.mrb[0].mxu0
    %810 = vdwg.mxu0
    %v811 = vadd.f32 %v103, %v805
    %v812 = vadd.f32 %v106, %v808
    %v813 = vld [vmem:[%s9 + $0x4] sm:$0x1]
    %v814 = vlaneseq
    %v815 = vshrl.u32 %v814, 7
    %v816 = vsub.s32 0, %v815
    %v817 = vrot.slane %v813, %v816
    %v818 = vadd.f32 %v811, %v817
    %v819 = vadd.f32 %v812, %v817
    %v820 = vld [vmem:[%s9 + $0x2] sm:$0x1]
    %v821 = vld [vmem:[%s9 + $0x3] sm:$0x1]
    %v822 = vsel %vm113, %v818, 0.0
    %823 = vadd.xlane.f32.xlu0 %v822
    %v824 = vpop.xlane.xlu0 %823
    %v825 = vsel %vm113, %v819, 0.0
    %826 = vadd.xlane.f32.xlu0 %v825
    %v827 = vpop.xlane.xlu0 %826
    %v828 = vmul.f32 %v824, %v120
    %v829 = vmul.f32 %v827, %v120
    %v830 = vsub.f32 %v818, %v828
    %v831 = vsub.f32 %v819, %v829
    %v832 = vmul.f32 %v830, %v830
    %v833 = vmul.f32 %v831, %v831
    %v834 = vsel %vm113, %v832, 0.0
    %835 = vadd.xlane.f32.xlu0 %v834
    %v836 = vpop.xlane.xlu0 %835
    %v837 = vsel %vm113, %v833, 0.0
    %838 = vadd.xlane.f32.xlu0 %v837
    %v839 = vpop.xlane.xlu0 %838
    %v840 = vmul.f32 %v836, %v120
    %v841 = vmul.f32 %v839, %v120
    %v842 = vadd.f32 %v840, 1e-05
    %v843 = vadd.f32 %v841, 1e-05
    %v844 = vrsqrt.pop %v842
    %v845 = vrsqrt.pop %v843
    %v846 = vmul.f32 %v830, %v844
    %v847 = vmul.f32 %v831, %v845
    %v848 = vlaneseq
    %v849 = vshrl.u32 %v848, 7
    %v850 = vsub.s32 0, %v849
    %v851 = vrot.slane %v820, %v850
    %v852 = vmul.f32 %v846, %v851
    %v853 = vmul.f32 %v847, %v851
    %v854 = vlaneseq
    %v855 = vshrl.u32 %v854, 7
    %v856 = vsub.s32 0, %v855
    %v857 = vrot.slane %v821, %v856
    %v858 = vadd.f32 %v852, %v857
    %v859 = vadd.f32 %v853, %v857
    %v860 = vpack.c.bf16 %v859, %v858
    %v861 = vld [vmem:[%s6] sm:$0xf]
    %v862 = vld [vmem:[%s6 + $0x4] sm:$0xf]
    %v863 = vld [vmem:[%s6 + $0x8] sm:$0xf]
    %v864 = vld [vmem:[%s6 + $0xc] sm:$0xf]
    %v865 = vld [vmem:[%s9 + $0x5] sm:$0x1]
    %v866 = vlaneseq
    %v867 = vshrl.u32 %v866, 7
    %v868 = vsub.s32 0, %v867
    %v869 = vrot.slane %v865, %v868
    %v874 = vunpack.c.l.b16 %v861
    %v875 = vunpack.c.l.b16 %v862
    %v876 = vunpack.c.l.b16 %v863
    %v877 = vunpack.c.l.b16 %v864
    %v878 = vpack.c.b16 %v875, %v874
    %v879 = vpack.c.b16 %v877, %v876
    %v883 = vsel %vm113, %v860, 0
    %885 = vmatprep.subr.bf16.mxu0 0
    %886 = vmatpush1.bf16.msra.mxu0 %v878
    %887 = vmatprep.subr.bf16.mxu0 0
    %888 = vmatpush1.bf16.msra.mxu0 %v879
    %889 = vmatprep.subr.bf16.mxu0 0
    %890 = vmatpush1.bf16.msra.mxu0 0
    %891 = vmatprep.subr.bf16.mxu0 0
    %892 = vmatpush1.bf16.msra.mxu0 0
    %893 = vmatprep.subr.bf16.mxu0 0
    %894 = vmatpush1.bf16.msra.mxu0 0
    %895 = vmatprep.subr.bf16.mxu0 0
    %896 = vmatpush1.bf16.msra.mxu0 0
    %897 = vmatprep.subr.bf16.mxu0 0
    %898 = vmatpush1.bf16.msra.mxu0 0
    %899 = vmatprep.subr.bf16.mxu0 0
    %900 = vmatpush1.bf16.msra.mxu0 0
    %901 = vmatprep.subr.bf16.mxu0 0
    %902 = vmatpush1.bf16.msra.mxu0 0
    %903 = vmatprep.subr.bf16.mxu0 0
    %904 = vmatpush1.bf16.msra.mxu0 0
    %905 = vmatprep.subr.bf16.mxu0 0
    %906 = vmatpush1.bf16.msra.mxu0 0
    %907 = vmatprep.subr.bf16.mxu0 0
    %908 = vmatpush1.bf16.msra.mxu0 0
    %909 = vmatprep.subr.bf16.mxu0 0
    %910 = vmatpush1.bf16.msra.mxu0 0
    %911 = vmatprep.subr.bf16.mxu0 0
    %912 = vmatpush1.bf16.msra.mxu0 0
    %913 = vmatprep.subr.bf16.mxu0 0
    %914 = vmatpush1.bf16.msra.mxu0 0
    %915 = vmatprep.subr.bf16.mxu0 0
    %916 = vmatpush1.bf16.msra.mxu0 0
    %917 = vmatprep.mubr.bf16.mxu0 0
    %918 = vmatmul.mubr.bf16.gmra.mrb[0].mxu0 %v883
    %v919 = vpop.f32.mrb[0].mxu0
    %v920 = vadd.f32 %v869, %v919
    %v921 = vpop.f32.mrb[0].mxu0
    %v922 = vpop.f32.mrb[0].mxu0
    %v923 = vadd.f32 %v869, %v922
    %v924 = vpop.f32.mrb[0].mxu0
    %925 = vdwg.mxu0
    %v926 = vmul.f32 %v920, 0.5
    %v927 = vmul.f32 %v923, 0.5
    %v928 = vmul.f32 %v920, 0.70710677
    %v929 = vmul.f32 %v923, 0.70710677
    %v930 = verf.f32.pop %v928
    %v931 = verf.f32.pop %v929
    %v932 = vadd.f32 %v930, 1.0
    %v933 = vadd.f32 %v931, 1.0
    %v934 = vmul.f32 %v926, %v932
    %v935 = vmul.f32 %v927, %v933
    %v936 = vpack.c.bf16 %v935, %v934
    %v937 = vld [vmem:[%s7] sm:$0xf]
    %v938 = vld [vmem:[%s7 + $0x4] sm:$0xf]
    %v939 = vld [vmem:[%s7 + $0x8] sm:$0xf]
    %v940 = vld [vmem:[%s7 + $0xc] sm:$0xf]
    %v941 = vld [vmem:[%s7 + $0x10] sm:$0xf]
    %v942 = vld [vmem:[%s7 + $0x14] sm:$0xf]
    %v943 = vld [vmem:[%s7 + $0x18] sm:$0xf]
    %v944 = vld [vmem:[%s7 + $0x1c] sm:$0xf]
    %v945 = vld [vmem:[%s7 + $0x20] sm:$0xf]
    %v946 = vld [vmem:[%s7 + $0x24] sm:$0xf]
    %v947 = vld [vmem:[%s7 + $0x28] sm:$0xf]
    %v948 = vld [vmem:[%s7 + $0x2c] sm:$0xf]
    %v949 = vld [vmem:[%s7 + $0x30] sm:$0xf]
    %v950 = vld [vmem:[%s7 + $0x34] sm:$0xf]
    %v951 = vld [vmem:[%s7 + $0x38] sm:$0xf]
    %v952 = vld [vmem:[%s7 + $0x3c] sm:$0xf]
    %v953 = vld [vmem:[%s9 + $0x6] sm:$0x1]
    %v954 = vlaneseq
    %v955 = vshrl.u32 %v954, 7
    %v956 = vsub.s32 0, %v955
    %v957 = vrot.slane %v953, %v956
    %v974 = vunpack.c.l.b16 %v937
    %v975 = vunpack.c.l.b16 %v938
    %v976 = vunpack.c.l.b16 %v939
    %v977 = vunpack.c.l.b16 %v940
    %v978 = vunpack.c.l.b16 %v941
    %v979 = vunpack.c.l.b16 %v942
    %v980 = vunpack.c.l.b16 %v943
    %v981 = vunpack.c.l.b16 %v944
    %v982 = vunpack.c.l.b16 %v945
    %v983 = vunpack.c.l.b16 %v946
    %v984 = vunpack.c.l.b16 %v947
    %v985 = vunpack.c.l.b16 %v948
    %v986 = vunpack.c.l.b16 %v949
    %v987 = vunpack.c.l.b16 %v950
    %v988 = vunpack.c.l.b16 %v951
    %v989 = vunpack.c.l.b16 %v952
    %v990 = vpack.c.b16 %v975, %v974
    %v991 = vpack.c.b16 %v977, %v976
    %v992 = vpack.c.b16 %v979, %v978
    %v993 = vpack.c.b16 %v981, %v980
    %v994 = vpack.c.b16 %v983, %v982
    %v995 = vpack.c.b16 %v985, %v984
    %v996 = vpack.c.b16 %v987, %v986
    %v997 = vpack.c.b16 %v989, %v988
    %1006 = vmatprep.subr.bf16.mxu0 0
    %1007 = vmatpush1.bf16.msra.mxu0 %v990
    %1008 = vmatprep.subr.bf16.mxu0 0
    %1009 = vmatpush1.bf16.msra.mxu0 %v991
    %1010 = vmatprep.subr.bf16.mxu0 0
    %1011 = vmatpush1.bf16.msra.mxu0 %v992
    %1012 = vmatprep.subr.bf16.mxu0 0
    %1013 = vmatpush1.bf16.msra.mxu0 %v993
    %1014 = vmatprep.subr.bf16.mxu0 0
    %1015 = vmatpush1.bf16.msra.mxu0 %v994
    %1016 = vmatprep.subr.bf16.mxu0 0
    %1017 = vmatpush1.bf16.msra.mxu0 %v995
    %1018 = vmatprep.subr.bf16.mxu0 0
    %1019 = vmatpush1.bf16.msra.mxu0 %v996
    %1020 = vmatprep.subr.bf16.mxu0 0
    %1021 = vmatpush1.bf16.msra.mxu0 %v997
    %1022 = vmatprep.subr.bf16.mxu0 0
    %1023 = vmatpush1.bf16.msra.mxu0 0
    %1024 = vmatprep.subr.bf16.mxu0 0
    %1025 = vmatpush1.bf16.msra.mxu0 0
    %1026 = vmatprep.subr.bf16.mxu0 0
    %1027 = vmatpush1.bf16.msra.mxu0 0
    %1028 = vmatprep.subr.bf16.mxu0 0
    %1029 = vmatpush1.bf16.msra.mxu0 0
    %1030 = vmatprep.subr.bf16.mxu0 0
    %1031 = vmatpush1.bf16.msra.mxu0 0
    %1032 = vmatprep.subr.bf16.mxu0 0
    %1033 = vmatpush1.bf16.msra.mxu0 0
    %1034 = vmatprep.subr.bf16.mxu0 0
    %1035 = vmatpush1.bf16.msra.mxu0 0
    %1036 = vmatprep.subr.bf16.mxu0 0
    %1037 = vmatpush1.bf16.msra.mxu0 0
    %1038 = vmatprep.mubr.bf16.mxu0 0
    %1039 = vmatmul.mubr.bf16.gmra.mrb[0].mxu0 %v936
    %v1040 = vpop.f32.mrb[0].mxu0
    %v1041 = vadd.f32 %v957, %v1040
    %v1042 = vpop.f32.mrb[0].mxu0
    %v1043 = vpop.f32.mrb[0].mxu0
    %v1044 = vadd.f32 %v957, %v1043
    %v1045 = vpop.f32.mrb[0].mxu0
    %1046 = vdwg.mxu0
    %v1047 = vadd.f32 %v818, %v1041
    %v1048 = vadd.f32 %v819, %v1044
    %v1049 = vld [vmem:[%s9 + $0x7] sm:$0x1]
    %v1050 = vld [vmem:[%s9 + $0x8] sm:$0x1]
    %v1051 = vsel %vm113, %v1047, 0.0
    %1052 = vadd.xlane.f32.xlu0 %v1051
    %v1053 = vpop.xlane.xlu0 %1052
    %v1054 = vsel %vm113, %v1048, 0.0
    %1055 = vadd.xlane.f32.xlu0 %v1054
    %v1056 = vpop.xlane.xlu0 %1055
    %v1057 = vmul.f32 %v1053, %v120
    %v1058 = vmul.f32 %v1056, %v120
    %v1059 = vsub.f32 %v1047, %v1057
    %v1060 = vsub.f32 %v1048, %v1058
    %v1061 = vmul.f32 %v1059, %v1059
    %v1062 = vmul.f32 %v1060, %v1060
    %v1063 = vsel %vm113, %v1061, 0.0
    %1064 = vadd.xlane.f32.xlu0 %v1063
    %v1065 = vpop.xlane.xlu0 %1064
    %v1066 = vsel %vm113, %v1062, 0.0
    %1067 = vadd.xlane.f32.xlu0 %v1066
    %v1068 = vpop.xlane.xlu0 %1067
    %v1069 = vmul.f32 %v1065, %v120
    %v1070 = vmul.f32 %v1068, %v120
    %v1071 = vadd.f32 %v1069, 1e-05
    %v1072 = vadd.f32 %v1070, 1e-05
    %v1073 = vrsqrt.pop %v1071
    %v1074 = vrsqrt.pop %v1072
    %v1075 = vmul.f32 %v1059, %v1073
    %v1076 = vmul.f32 %v1060, %v1074
    %v1077 = vlaneseq
    %v1078 = vshrl.u32 %v1077, 7
    %v1079 = vsub.s32 0, %v1078
    %v1080 = vrot.slane %v1049, %v1079
    %v1081 = vmul.f32 %v1075, %v1080
    %v1082 = vmul.f32 %v1076, %v1080
    %v1083 = vlaneseq
    %v1084 = vshrl.u32 %v1083, 7
    %v1085 = vsub.s32 0, %v1084
    %v1086 = vrot.slane %v1050, %v1085
    %v1087 = vadd.f32 %v1081, %v1086
    %v1088 = vadd.f32 %v1082, %v1086
    %v1089 = vpack.c.bf16 %v1088, %v1087
    %s1090 = scalar_lea.vmem %s4, 16
    %v1091 = vld [vmem:[%s1090] sm:$0xf]
    %v1092 = vld [vmem:[%s1090 + $0x4] sm:$0xf]
    %v1093 = vld [vmem:[%s1090 + $0x8] sm:$0xf]
    %v1094 = vld [vmem:[%s1090 + $0xc] sm:$0xf]
    %v1099 = vunpack.c.l.b16 %v1091
    %v1100 = vunpack.c.l.b16 %v1092
    %v1101 = vunpack.c.l.b16 %v1093
    %v1102 = vunpack.c.l.b16 %v1094
    %v1103 = vpack.c.b16 %v1100, %v1099
    %v1104 = vpack.c.b16 %v1102, %v1101
    %v1108 = vsel %vm113, %v1089, 0
    %1110 = vmatprep.subr.bf16.mxu0 0
    %1111 = vmatpush1.bf16.msra.mxu0 %v1103
    %1112 = vmatprep.subr.bf16.mxu0 0
    %1113 = vmatpush1.bf16.msra.mxu0 %v1104
    %1114 = vmatprep.subr.bf16.mxu0 0
    %1115 = vmatpush1.bf16.msra.mxu0 0
    %1116 = vmatprep.subr.bf16.mxu0 0
    %1117 = vmatpush1.bf16.msra.mxu0 0
    %1118 = vmatprep.subr.bf16.mxu0 0
    %1119 = vmatpush1.bf16.msra.mxu0 0
    %1120 = vmatprep.subr.bf16.mxu0 0
    %1121 = vmatpush1.bf16.msra.mxu0 0
    %1122 = vmatprep.subr.bf16.mxu0 0
    %1123 = vmatpush1.bf16.msra.mxu0 0
    %1124 = vmatprep.subr.bf16.mxu0 0
    %1125 = vmatpush1.bf16.msra.mxu0 0
    %1126 = vmatprep.subr.bf16.mxu0 0
    %1127 = vmatpush1.bf16.msra.mxu0 0
    %1128 = vmatprep.subr.bf16.mxu0 0
    %1129 = vmatpush1.bf16.msra.mxu0 0
    %1130 = vmatprep.subr.bf16.mxu0 0
    %1131 = vmatpush1.bf16.msra.mxu0 0
    %1132 = vmatprep.subr.bf16.mxu0 0
    %1133 = vmatpush1.bf16.msra.mxu0 0
    %1134 = vmatprep.subr.bf16.mxu0 0
    %1135 = vmatpush1.bf16.msra.mxu0 0
    %1136 = vmatprep.subr.bf16.mxu0 0
    %1137 = vmatpush1.bf16.msra.mxu0 0
    %1138 = vmatprep.subr.bf16.mxu0 0
    %1139 = vmatpush1.bf16.msra.mxu0 0
    %1140 = vmatprep.subr.bf16.mxu0 0
    %1141 = vmatpush1.bf16.msra.mxu0 0
    %1142 = vmatprep.mubr.bf16.mxu0 0
    %1143 = vmatmul.mubr.bf16.gmra.mrb[0].mxu0 %v1108
    %v1144 = vpop.f32.mrb[0].mxu0
    %v1145 = vadd.f32 0.0, %v1144
    %v1146 = vpop.f32.mrb[0].mxu0
    %v1147 = vpop.f32.mrb[0].mxu0
    %v1148 = vadd.f32 0.0, %v1147
    %v1149 = vpop.f32.mrb[0].mxu0
    %1150 = vdwg.mxu0
    %1153 = vrot.lane.b32.xlu0 %v1145, 120
    %v1154 = vpop.permute.xlu0 %1153
    %1155 = vrot.lane.b32.xlu0 %v1148, 120
    %v1156 = vpop.permute.xlu0 %1155
    %1159 = vrot.lane.b32.xlu0 %v1145, 112
    %v1160 = vpop.permute.xlu0 %1159
    %1161 = vrot.lane.b32.xlu0 %v1148, 112
    %v1162 = vpop.permute.xlu0 %1161
    %1165 = vrot.lane.b32.xlu0 %v1145, 104
    %v1166 = vpop.permute.xlu0 %1165
    %1167 = vrot.lane.b32.xlu0 %v1148, 104
    %v1168 = vpop.permute.xlu0 %1167
    %v1171 = vpack.c.bf16 %v1148, %v1145
    %v1172 = vpack.c.bf16 %v1156, %v1154
    %v1173 = vpack.c.bf16 %v1162, %v1160
    %v1174 = vpack.c.bf16 %v1168, %v1166
    %1176 = vrot.lane.b32.xlu0 %v1171, 96
    %v1177 = vpop.permute.xlu0 %1176
    %v1179 = vsel %vm241, %v1171, 0
    %v1182 = vsel %vm241, %v1177, 0
    %1184 = vmatprep.subr.bf16.mxu0 0
    %1185 = vmatpush1.bf16.xpose.msra.mxu0 %v1182
    %1186 = vmatprep.subr.bf16.mxu0 0
    %1187 = vmatpush1.bf16.xpose.msra.mxu0 0
    %1188 = vmatprep.subr.bf16.mxu0 0
    %1189 = vmatpush1.bf16.xpose.msra.mxu0 0
    %1190 = vmatprep.subr.bf16.mxu0 0
    %1191 = vmatpush1.bf16.xpose.msra.mxu0 0
    %1192 = vmatprep.subr.bf16.mxu0 0
    %1193 = vmatpush1.bf16.xpose.msra.mxu0 0
    %1194 = vmatprep.subr.bf16.mxu0 0
    %1195 = vmatpush1.bf16.xpose.msra.mxu0 0
    %1196 = vmatprep.subr.bf16.mxu0 0
    %1197 = vmatpush1.bf16.xpose.msra.mxu0 0
    %1198 = vmatprep.subr.bf16.mxu0 0
    %1199 = vmatpush1.bf16.xpose.msra.mxu0 0
    %1200 = vmatprep.subr.bf16.mxu0 0
    %1201 = vmatpush1.bf16.xpose.msra.mxu0 0
    %1202 = vmatprep.subr.bf16.mxu0 0
    %1203 = vmatpush1.bf16.xpose.msra.mxu0 0
    %1204 = vmatprep.subr.bf16.mxu0 0
    %1205 = vmatpush1.bf16.xpose.msra.mxu0 0
    %1206 = vmatprep.subr.bf16.mxu0 0
    %1207 = vmatpush1.bf16.xpose.msra.mxu0 0
    %1208 = vmatprep.subr.bf16.mxu0 0
    %1209 = vmatpush1.bf16.xpose.msra.mxu0 0
    %1210 = vmatprep.subr.bf16.mxu0 0
    %1211 = vmatpush1.bf16.xpose.msra.mxu0 0
    %1212 = vmatprep.subr.bf16.mxu0 0
    %1213 = vmatpush1.bf16.xpose.msra.mxu0 0
    %1214 = vmatprep.subr.bf16.mxu0 0
    %1215 = vmatpush1.bf16.xpose.msra.mxu0 0
    %1216 = vmatprep.mubr.bf16.mxu0 0
    %1217 = vmatmul.mubr.bf16.gmra.mrb[0].mxu0 %v1179
    %v1218 = vpop.f32.mrb[0].mxu0
    %v1219 = vadd.f32 %v109, %v1218
    %v1220 = vpop.f32.mrb[0].mxu0
    %v1221 = vpop.f32.mrb[0].mxu0
    %v1222 = vadd.f32 %v110, %v1221
    %v1223 = vpop.f32.mrb[0].mxu0
    %1224 = vdwg.mxu0
    %1226 = vrot.lane.b32.xlu0 %v1172, 96
    %v1227 = vpop.permute.xlu0 %1226
    %v1229 = vsel %vm241, %v1172, 0
    %v1232 = vsel %vm241, %v1227, 0
    %1234 = vmatprep.subr.bf16.mxu0 0
    %1235 = vmatpush1.bf16.xpose.msra.mxu0 %v1232
    %1236 = vmatprep.subr.bf16.mxu0 0
    %1237 = vmatpush1.bf16.xpose.msra.mxu0 0
    %1238 = vmatprep.subr.bf16.mxu0 0
    %1239 = vmatpush1.bf16.xpose.msra.mxu0 0
    %1240 = vmatprep.subr.bf16.mxu0 0
    %1241 = vmatpush1.bf16.xpose.msra.mxu0 0
    %1242 = vmatprep.subr.bf16.mxu0 0
    %1243 = vmatpush1.bf16.xpose.msra.mxu0 0
    %1244 = vmatprep.subr.bf16.mxu0 0
    %1245 = vmatpush1.bf16.xpose.msra.mxu0 0
    %1246 = vmatprep.subr.bf16.mxu0 0
    %1247 = vmatpush1.bf16.xpose.msra.mxu0 0
    %1248 = vmatprep.subr.bf16.mxu0 0
    %1249 = vmatpush1.bf16.xpose.msra.mxu0 0
    %1250 = vmatprep.subr.bf16.mxu0 0
    %1251 = vmatpush1.bf16.xpose.msra.mxu0 0
    %1252 = vmatprep.subr.bf16.mxu0 0
    %1253 = vmatpush1.bf16.xpose.msra.mxu0 0
    %1254 = vmatprep.subr.bf16.mxu0 0
    %1255 = vmatpush1.bf16.xpose.msra.mxu0 0
    %1256 = vmatprep.subr.bf16.mxu0 0
    %1257 = vmatpush1.bf16.xpose.msra.mxu0 0
    %1258 = vmatprep.subr.bf16.mxu0 0
    %1259 = vmatpush1.bf16.xpose.msra.mxu0 0
    %1260 = vmatprep.subr.bf16.mxu0 0
    %1261 = vmatpush1.bf16.xpose.msra.mxu0 0
    %1262 = vmatprep.subr.bf16.mxu0 0
    %1263 = vmatpush1.bf16.xpose.msra.mxu0 0
    %1264 = vmatprep.subr.bf16.mxu0 0
    %1265 = vmatpush1.bf16.xpose.msra.mxu0 0
    %1266 = vmatprep.mubr.bf16.mxu0 0
    %1267 = vmatmul.mubr.bf16.gmra.mrb[0].mxu0 %v1229
    %v1268 = vpop.f32.mrb[0].mxu0
    %v1269 = vadd.f32 %v109, %v1268
    %v1270 = vpop.f32.mrb[0].mxu0
    %v1271 = vpop.f32.mrb[0].mxu0
    %v1272 = vadd.f32 %v110, %v1271
    %v1273 = vpop.f32.mrb[0].mxu0
    %1274 = vdwg.mxu0
    %1276 = vrot.lane.b32.xlu0 %v1173, 96
    %v1277 = vpop.permute.xlu0 %1276
    %v1279 = vsel %vm241, %v1173, 0
    %v1282 = vsel %vm241, %v1277, 0
    %1284 = vmatprep.subr.bf16.mxu0 0
    %1285 = vmatpush1.bf16.xpose.msra.mxu0 %v1282
    %1286 = vmatprep.subr.bf16.mxu0 0
    %1287 = vmatpush1.bf16.xpose.msra.mxu0 0
    %1288 = vmatprep.subr.bf16.mxu0 0
    %1289 = vmatpush1.bf16.xpose.msra.mxu0 0
    %1290 = vmatprep.subr.bf16.mxu0 0
    %1291 = vmatpush1.bf16.xpose.msra.mxu0 0
    %1292 = vmatprep.subr.bf16.mxu0 0
    %1293 = vmatpush1.bf16.xpose.msra.mxu0 0
    %1294 = vmatprep.subr.bf16.mxu0 0
    %1295 = vmatpush1.bf16.xpose.msra.mxu0 0
    %1296 = vmatprep.subr.bf16.mxu0 0
    %1297 = vmatpush1.bf16.xpose.msra.mxu0 0
    %1298 = vmatprep.subr.bf16.mxu0 0
    %1299 = vmatpush1.bf16.xpose.msra.mxu0 0
    %1300 = vmatprep.subr.bf16.mxu0 0
    %1301 = vmatpush1.bf16.xpose.msra.mxu0 0
    %1302 = vmatprep.subr.bf16.mxu0 0
    %1303 = vmatpush1.bf16.xpose.msra.mxu0 0
    %1304 = vmatprep.subr.bf16.mxu0 0
    %1305 = vmatpush1.bf16.xpose.msra.mxu0 0
    %1306 = vmatprep.subr.bf16.mxu0 0
    %1307 = vmatpush1.bf16.xpose.msra.mxu0 0
    %1308 = vmatprep.subr.bf16.mxu0 0
    %1309 = vmatpush1.bf16.xpose.msra.mxu0 0
    %1310 = vmatprep.subr.bf16.mxu0 0
    %1311 = vmatpush1.bf16.xpose.msra.mxu0 0
    %1312 = vmatprep.subr.bf16.mxu0 0
    %1313 = vmatpush1.bf16.xpose.msra.mxu0 0
    %1314 = vmatprep.subr.bf16.mxu0 0
    %1315 = vmatpush1.bf16.xpose.msra.mxu0 0
    %1316 = vmatprep.mubr.bf16.mxu0 0
    %1317 = vmatmul.mubr.bf16.gmra.mrb[0].mxu0 %v1279
    %v1318 = vpop.f32.mrb[0].mxu0
    %v1319 = vadd.f32 %v109, %v1318
    %v1320 = vpop.f32.mrb[0].mxu0
    %v1321 = vpop.f32.mrb[0].mxu0
    %v1322 = vadd.f32 %v110, %v1321
    %v1323 = vpop.f32.mrb[0].mxu0
    %1324 = vdwg.mxu0
    %1326 = vrot.lane.b32.xlu0 %v1174, 96
    %v1327 = vpop.permute.xlu0 %1326
    %v1329 = vsel %vm241, %v1174, 0
    %v1332 = vsel %vm241, %v1327, 0
    %1334 = vmatprep.subr.bf16.mxu0 0
    %1335 = vmatpush1.bf16.xpose.msra.mxu0 %v1332
    %1336 = vmatprep.subr.bf16.mxu0 0
    %1337 = vmatpush1.bf16.xpose.msra.mxu0 0
    %1338 = vmatprep.subr.bf16.mxu0 0
    %1339 = vmatpush1.bf16.xpose.msra.mxu0 0
    %1340 = vmatprep.subr.bf16.mxu0 0
    %1341 = vmatpush1.bf16.xpose.msra.mxu0 0
    %1342 = vmatprep.subr.bf16.mxu0 0
    %1343 = vmatpush1.bf16.xpose.msra.mxu0 0
    %1344 = vmatprep.subr.bf16.mxu0 0
    %1345 = vmatpush1.bf16.xpose.msra.mxu0 0
    %1346 = vmatprep.subr.bf16.mxu0 0
    %1347 = vmatpush1.bf16.xpose.msra.mxu0 0
    %1348 = vmatprep.subr.bf16.mxu0 0
    %1349 = vmatpush1.bf16.xpose.msra.mxu0 0
    %1350 = vmatprep.subr.bf16.mxu0 0
    %1351 = vmatpush1.bf16.xpose.msra.mxu0 0
    %1352 = vmatprep.subr.bf16.mxu0 0
    %1353 = vmatpush1.bf16.xpose.msra.mxu0 0
    %1354 = vmatprep.subr.bf16.mxu0 0
    %1355 = vmatpush1.bf16.xpose.msra.mxu0 0
    %1356 = vmatprep.subr.bf16.mxu0 0
    %1357 = vmatpush1.bf16.xpose.msra.mxu0 0
    %1358 = vmatprep.subr.bf16.mxu0 0
    %1359 = vmatpush1.bf16.xpose.msra.mxu0 0
    %1360 = vmatprep.subr.bf16.mxu0 0
    %1361 = vmatpush1.bf16.xpose.msra.mxu0 0
    %1362 = vmatprep.subr.bf16.mxu0 0
    %1363 = vmatpush1.bf16.xpose.msra.mxu0 0
    %1364 = vmatprep.subr.bf16.mxu0 0
    %1365 = vmatpush1.bf16.xpose.msra.mxu0 0
    %1366 = vmatprep.mubr.bf16.mxu0 0
    %1367 = vmatmul.mubr.bf16.gmra.mrb[0].mxu0 %v1329
    %v1368 = vpop.f32.mrb[0].mxu0
    %v1369 = vadd.f32 %v109, %v1368
    %v1370 = vpop.f32.mrb[0].mxu0
    %v1371 = vpop.f32.mrb[0].mxu0
    %v1372 = vadd.f32 %v110, %v1371
    %v1373 = vpop.f32.mrb[0].mxu0
    %1374 = vdwg.mxu0
    %v1375 = vsel %vm64, %v1219, -inf
    %1376 = vmax.xlane.f32.xlu0 %v1375
    %v1377 = vpop.xlane.xlu0 %1376
    %v1378 = vsel %vm64, %v1222, -inf
    %1379 = vmax.xlane.f32.xlu0 %v1378
    %v1380 = vpop.xlane.xlu0 %1379
    %v1381 = vsel %vm64, %v1269, -inf
    %1382 = vmax.xlane.f32.xlu0 %v1381
    %v1383 = vpop.xlane.xlu0 %1382
    %v1384 = vsel %vm64, %v1272, -inf
    %1385 = vmax.xlane.f32.xlu0 %v1384
    %v1386 = vpop.xlane.xlu0 %1385
    %v1387 = vsel %vm64, %v1319, -inf
    %1388 = vmax.xlane.f32.xlu0 %v1387
    %v1389 = vpop.xlane.xlu0 %1388
    %v1390 = vsel %vm64, %v1322, -inf
    %1391 = vmax.xlane.f32.xlu0 %v1390
    %v1392 = vpop.xlane.xlu0 %1391
    %v1393 = vsel %vm64, %v1369, -inf
    %1394 = vmax.xlane.f32.xlu0 %v1393
    %v1395 = vpop.xlane.xlu0 %1394
    %v1396 = vsel %vm64, %v1372, -inf
    %1397 = vmax.xlane.f32.xlu0 %v1396
    %v1398 = vpop.xlane.xlu0 %1397
    %v1399 = vsub.f32 %v1219, %v1377
    %v1400 = vsub.f32 %v1222, %v1380
    %v1401 = vsub.f32 %v1269, %v1383
    %v1402 = vsub.f32 %v1272, %v1386
    %v1403 = vsub.f32 %v1319, %v1389
    %v1404 = vsub.f32 %v1322, %v1392
    %v1405 = vsub.f32 %v1369, %v1395
    %v1406 = vsub.f32 %v1372, %v1398
    %v1407 = vmul.f32 %v1399, 1.442695
    %v1408 = vpow.pop %v1407
    %v1409 = vmul.f32 %v1400, 1.442695
    %v1410 = vpow.pop %v1409
    %v1411 = vmul.f32 %v1401, 1.442695
    %v1412 = vpow.pop %v1411
    %v1413 = vmul.f32 %v1402, 1.442695
    %v1414 = vpow.pop %v1413
    %v1415 = vmul.f32 %v1403, 1.442695
    %v1416 = vpow.pop %v1415
    %v1417 = vmul.f32 %v1404, 1.442695
    %v1418 = vpow.pop %v1417
    %v1419 = vmul.f32 %v1405, 1.442695
    %v1420 = vpow.pop %v1419
    %v1421 = vmul.f32 %v1406, 1.442695
    %v1422 = vpow.pop %v1421
    %v1423 = vsel %vm64, %v1408, 0.0
    %1424 = vadd.xlane.f32.xlu0 %v1423
    %v1425 = vpop.xlane.xlu0 %1424
    %v1426 = vsel %vm64, %v1410, 0.0
    %1427 = vadd.xlane.f32.xlu0 %v1426
    %v1428 = vpop.xlane.xlu0 %1427
    %v1429 = vsel %vm64, %v1412, 0.0
    %1430 = vadd.xlane.f32.xlu0 %v1429
    %v1431 = vpop.xlane.xlu0 %1430
    %v1432 = vsel %vm64, %v1414, 0.0
    %1433 = vadd.xlane.f32.xlu0 %v1432
    %v1434 = vpop.xlane.xlu0 %1433
    %v1435 = vsel %vm64, %v1416, 0.0
    %1436 = vadd.xlane.f32.xlu0 %v1435
    %v1437 = vpop.xlane.xlu0 %1436
    %v1438 = vsel %vm64, %v1418, 0.0
    %1439 = vadd.xlane.f32.xlu0 %v1438
    %v1440 = vpop.xlane.xlu0 %1439
    %v1441 = vsel %vm64, %v1420, 0.0
    %1442 = vadd.xlane.f32.xlu0 %v1441
    %v1443 = vpop.xlane.xlu0 %1442
    %v1444 = vsel %vm64, %v1422, 0.0
    %1445 = vadd.xlane.f32.xlu0 %v1444
    %v1446 = vpop.xlane.xlu0 %1445
    %v1447 = vrcp.pop %v1425
    %v1448 = vmul.f32 %v1408, %v1447
    %v1449 = vrcp.pop %v1428
    %v1450 = vmul.f32 %v1410, %v1449
    %v1451 = vrcp.pop %v1431
    %v1452 = vmul.f32 %v1412, %v1451
    %v1453 = vrcp.pop %v1434
    %v1454 = vmul.f32 %v1414, %v1453
    %v1455 = vrcp.pop %v1437
    %v1456 = vmul.f32 %v1416, %v1455
    %v1457 = vrcp.pop %v1440
    %v1458 = vmul.f32 %v1418, %v1457
    %v1459 = vrcp.pop %v1443
    %v1460 = vmul.f32 %v1420, %v1459
    %v1461 = vrcp.pop %v1446
    %v1462 = vmul.f32 %v1422, %v1461
    %v1463 = vpack.c.bf16 %v1450, %v1448
    %v1464 = vpack.c.bf16 %v1454, %v1452
    %v1465 = vpack.c.bf16 %v1458, %v1456
    %v1466 = vpack.c.bf16 %v1462, %v1460
    %1467 = vrot.lane.b32.xlu0 %v1171, 64
    %v1468 = vpop.permute.xlu0 %1467
    %v1471 = vsel %vm64, %v1463, 0
    %1473 = vmatprep.subr.bf16.mxu0 0
    %1474 = vmatpush1.bf16.msra.mxu0 %v1468
    %1475 = vmatprep.subr.bf16.mxu0 0
    %1476 = vmatpush1.bf16.msra.mxu0 0
    %1477 = vmatprep.subr.bf16.mxu0 0
    %1478 = vmatpush1.bf16.msra.mxu0 0
    %1479 = vmatprep.subr.bf16.mxu0 0
    %1480 = vmatpush1.bf16.msra.mxu0 0
    %1481 = vmatprep.subr.bf16.mxu0 0
    %1482 = vmatpush1.bf16.msra.mxu0 0
    %1483 = vmatprep.subr.bf16.mxu0 0
    %1484 = vmatpush1.bf16.msra.mxu0 0
    %1485 = vmatprep.subr.bf16.mxu0 0
    %1486 = vmatpush1.bf16.msra.mxu0 0
    %1487 = vmatprep.subr.bf16.mxu0 0
    %1488 = vmatpush1.bf16.msra.mxu0 0
    %1489 = vmatprep.subr.bf16.mxu0 0
    %1490 = vmatpush1.bf16.msra.mxu0 0
    %1491 = vmatprep.subr.bf16.mxu0 0
    %1492 = vmatpush1.bf16.msra.mxu0 0
    %1493 = vmatprep.subr.bf16.mxu0 0
    %1494 = vmatpush1.bf16.msra.mxu0 0
    %1495 = vmatprep.subr.bf16.mxu0 0
    %1496 = vmatpush1.bf16.msra.mxu0 0
    %1497 = vmatprep.subr.bf16.mxu0 0
    %1498 = vmatpush1.bf16.msra.mxu0 0
    %1499 = vmatprep.subr.bf16.mxu0 0
    %1500 = vmatpush1.bf16.msra.mxu0 0
    %1501 = vmatprep.subr.bf16.mxu0 0
    %1502 = vmatpush1.bf16.msra.mxu0 0
    %1503 = vmatprep.subr.bf16.mxu0 0
    %1504 = vmatpush1.bf16.msra.mxu0 0
    %1505 = vmatprep.mubr.bf16.mxu0 0
    %1506 = vmatmul.mubr.bf16.gmra.mrb[0].mxu0 %v1471
    %v1507 = vpop.f32.mrb[0].mxu0
    %v1508 = vadd.f32 0.0, %v1507
    %v1509 = vpop.f32.mrb[0].mxu0
    %v1510 = vpop.f32.mrb[0].mxu0
    %v1511 = vadd.f32 0.0, %v1510
    %v1512 = vpop.f32.mrb[0].mxu0
    %1513 = vdwg.mxu0
    %1514 = vrot.lane.b32.xlu0 %v1172, 64
    %v1515 = vpop.permute.xlu0 %1514
    %v1518 = vsel %vm64, %v1464, 0
    %1520 = vmatprep.subr.bf16.mxu0 0
    %1521 = vmatpush1.bf16.msra.mxu0 %v1515
    %1522 = vmatprep.subr.bf16.mxu0 0
    %1523 = vmatpush1.bf16.msra.mxu0 0
    %1524 = vmatprep.subr.bf16.mxu0 0
    %1525 = vmatpush1.bf16.msra.mxu0 0
    %1526 = vmatprep.subr.bf16.mxu0 0
    %1527 = vmatpush1.bf16.msra.mxu0 0
    %1528 = vmatprep.subr.bf16.mxu0 0
    %1529 = vmatpush1.bf16.msra.mxu0 0
    %1530 = vmatprep.subr.bf16.mxu0 0
    %1531 = vmatpush1.bf16.msra.mxu0 0
    %1532 = vmatprep.subr.bf16.mxu0 0
    %1533 = vmatpush1.bf16.msra.mxu0 0
    %1534 = vmatprep.subr.bf16.mxu0 0
    %1535 = vmatpush1.bf16.msra.mxu0 0
    %1536 = vmatprep.subr.bf16.mxu0 0
    %1537 = vmatpush1.bf16.msra.mxu0 0
    %1538 = vmatprep.subr.bf16.mxu0 0
    %1539 = vmatpush1.bf16.msra.mxu0 0
    %1540 = vmatprep.subr.bf16.mxu0 0
    %1541 = vmatpush1.bf16.msra.mxu0 0
    %1542 = vmatprep.subr.bf16.mxu0 0
    %1543 = vmatpush1.bf16.msra.mxu0 0
    %1544 = vmatprep.subr.bf16.mxu0 0
    %1545 = vmatpush1.bf16.msra.mxu0 0
    %1546 = vmatprep.subr.bf16.mxu0 0
    %1547 = vmatpush1.bf16.msra.mxu0 0
    %1548 = vmatprep.subr.bf16.mxu0 0
    %1549 = vmatpush1.bf16.msra.mxu0 0
    %1550 = vmatprep.subr.bf16.mxu0 0
    %1551 = vmatpush1.bf16.msra.mxu0 0
    %1552 = vmatprep.mubr.bf16.mxu0 0
    %1553 = vmatmul.mubr.bf16.gmra.mrb[0].mxu0 %v1518
    %v1554 = vpop.f32.mrb[0].mxu0
    %v1555 = vadd.f32 0.0, %v1554
    %v1556 = vpop.f32.mrb[0].mxu0
    %v1557 = vpop.f32.mrb[0].mxu0
    %v1558 = vadd.f32 0.0, %v1557
    %v1559 = vpop.f32.mrb[0].mxu0
    %1560 = vdwg.mxu0
    %1561 = vrot.lane.b32.xlu0 %v1173, 64
    %v1562 = vpop.permute.xlu0 %1561
    %v1565 = vsel %vm64, %v1465, 0
    %1567 = vmatprep.subr.bf16.mxu0 0
    %1568 = vmatpush1.bf16.msra.mxu0 %v1562
    %1569 = vmatprep.subr.bf16.mxu0 0
    %1570 = vmatpush1.bf16.msra.mxu0 0
    %1571 = vmatprep.subr.bf16.mxu0 0
    %1572 = vmatpush1.bf16.msra.mxu0 0
    %1573 = vmatprep.subr.bf16.mxu0 0
    %1574 = vmatpush1.bf16.msra.mxu0 0
    %1575 = vmatprep.subr.bf16.mxu0 0
    %1576 = vmatpush1.bf16.msra.mxu0 0
    %1577 = vmatprep.subr.bf16.mxu0 0
    %1578 = vmatpush1.bf16.msra.mxu0 0
    %1579 = vmatprep.subr.bf16.mxu0 0
    %1580 = vmatpush1.bf16.msra.mxu0 0
    %1581 = vmatprep.subr.bf16.mxu0 0
    %1582 = vmatpush1.bf16.msra.mxu0 0
    %1583 = vmatprep.subr.bf16.mxu0 0
    %1584 = vmatpush1.bf16.msra.mxu0 0
    %1585 = vmatprep.subr.bf16.mxu0 0
    %1586 = vmatpush1.bf16.msra.mxu0 0
    %1587 = vmatprep.subr.bf16.mxu0 0
    %1588 = vmatpush1.bf16.msra.mxu0 0
    %1589 = vmatprep.subr.bf16.mxu0 0
    %1590 = vmatpush1.bf16.msra.mxu0 0
    %1591 = vmatprep.subr.bf16.mxu0 0
    %1592 = vmatpush1.bf16.msra.mxu0 0
    %1593 = vmatprep.subr.bf16.mxu0 0
    %1594 = vmatpush1.bf16.msra.mxu0 0
    %1595 = vmatprep.subr.bf16.mxu0 0
    %1596 = vmatpush1.bf16.msra.mxu0 0
    %1597 = vmatprep.subr.bf16.mxu0 0
    %1598 = vmatpush1.bf16.msra.mxu0 0
    %1599 = vmatprep.mubr.bf16.mxu0 0
    %1600 = vmatmul.mubr.bf16.gmra.mrb[0].mxu0 %v1565
    %v1601 = vpop.f32.mrb[0].mxu0
    %v1602 = vadd.f32 0.0, %v1601
    %v1603 = vpop.f32.mrb[0].mxu0
    %v1604 = vpop.f32.mrb[0].mxu0
    %v1605 = vadd.f32 0.0, %v1604
    %v1606 = vpop.f32.mrb[0].mxu0
    %1607 = vdwg.mxu0
    %1608 = vrot.lane.b32.xlu0 %v1174, 64
    %v1609 = vpop.permute.xlu0 %1608
    %v1612 = vsel %vm64, %v1466, 0
    %1614 = vmatprep.subr.bf16.mxu0 0
    %1615 = vmatpush1.bf16.msra.mxu0 %v1609
    %1616 = vmatprep.subr.bf16.mxu0 0
    %1617 = vmatpush1.bf16.msra.mxu0 0
    %1618 = vmatprep.subr.bf16.mxu0 0
    %1619 = vmatpush1.bf16.msra.mxu0 0
    %1620 = vmatprep.subr.bf16.mxu0 0
    %1621 = vmatpush1.bf16.msra.mxu0 0
    %1622 = vmatprep.subr.bf16.mxu0 0
    %1623 = vmatpush1.bf16.msra.mxu0 0
    %1624 = vmatprep.subr.bf16.mxu0 0
    %1625 = vmatpush1.bf16.msra.mxu0 0
    %1626 = vmatprep.subr.bf16.mxu0 0
    %1627 = vmatpush1.bf16.msra.mxu0 0
    %1628 = vmatprep.subr.bf16.mxu0 0
    %1629 = vmatpush1.bf16.msra.mxu0 0
    %1630 = vmatprep.subr.bf16.mxu0 0
    %1631 = vmatpush1.bf16.msra.mxu0 0
    %1632 = vmatprep.subr.bf16.mxu0 0
    %1633 = vmatpush1.bf16.msra.mxu0 0
    %1634 = vmatprep.subr.bf16.mxu0 0
    %1635 = vmatpush1.bf16.msra.mxu0 0
    %1636 = vmatprep.subr.bf16.mxu0 0
    %1637 = vmatpush1.bf16.msra.mxu0 0
    %1638 = vmatprep.subr.bf16.mxu0 0
    %1639 = vmatpush1.bf16.msra.mxu0 0
    %1640 = vmatprep.subr.bf16.mxu0 0
    %1641 = vmatpush1.bf16.msra.mxu0 0
    %1642 = vmatprep.subr.bf16.mxu0 0
    %1643 = vmatpush1.bf16.msra.mxu0 0
    %1644 = vmatprep.subr.bf16.mxu0 0
    %1645 = vmatpush1.bf16.msra.mxu0 0
    %1646 = vmatprep.mubr.bf16.mxu0 0
    %1647 = vmatmul.mubr.bf16.gmra.mrb[0].mxu0 %v1612
    %v1648 = vpop.f32.mrb[0].mxu0
    %v1649 = vadd.f32 0.0, %v1648
    %v1650 = vpop.f32.mrb[0].mxu0
    %v1651 = vpop.f32.mrb[0].mxu0
    %v1652 = vadd.f32 0.0, %v1651
    %v1653 = vpop.f32.mrb[0].mxu0
    %1654 = vdwg.mxu0
    %1657 = vrot.lane.b32.xlu0 %v1555, 8
    %v1658 = vpop.permute.xlu0 %1657
    %1659 = vrot.lane.b32.xlu0 %v1558, 8
    %v1660 = vpop.permute.xlu0 %1659
    %1665 = vrot.lane.b32.xlu0 %v1602, 16
    %v1666 = vpop.permute.xlu0 %1665
    %1667 = vrot.lane.b32.xlu0 %v1605, 16
    %v1668 = vpop.permute.xlu0 %1667
    %1673 = vrot.lane.b32.xlu0 %v1649, 24
    %v1674 = vpop.permute.xlu0 %1673
    %1675 = vrot.lane.b32.xlu0 %v1652, 24
    %v1676 = vpop.permute.xlu0 %1675
    %v1679 = vsel %vm241, %v1508, %v1658
    %v1680 = vsel %vm241, %v1511, %v1660
    %v1681 = vsel %vm64, %v1679, %v1666
    %v1682 = vsel %vm64, %v1680, %v1668
    %v1683 = vsel %vm747, %v1681, %v1674
    %v1684 = vsel %vm747, %v1682, %v1676
    %v1685 = vpack.c.bf16 %v1684, %v1683
    %s1686 = scalar_lea.vmem %s5, 16
    %v1687 = vld [vmem:[%s1686] sm:$0xf]
    %v1688 = vld [vmem:[%s1686 + $0x4] sm:$0xf]
    %v1689 = vld [vmem:[%s1686 + $0x8] sm:$0xf]
    %v1690 = vld [vmem:[%s1686 + $0xc] sm:$0xf]
    %v1695 = vunpack.c.l.b16 %v1687
    %v1696 = vunpack.c.l.b16 %v1688
    %v1697 = vunpack.c.l.b16 %v1689
    %v1698 = vunpack.c.l.b16 %v1690
    %v1699 = vpack.c.b16 %v1696, %v1695
    %v1700 = vpack.c.b16 %v1698, %v1697
    %v1704 = vsel %vm113, %v1685, 0
    %1706 = vmatprep.subr.bf16.mxu0 0
    %1707 = vmatpush1.bf16.msra.mxu0 %v1699
    %1708 = vmatprep.subr.bf16.mxu0 0
    %1709 = vmatpush1.bf16.msra.mxu0 %v1700
    %1710 = vmatprep.subr.bf16.mxu0 0
    %1711 = vmatpush1.bf16.msra.mxu0 0
    %1712 = vmatprep.subr.bf16.mxu0 0
    %1713 = vmatpush1.bf16.msra.mxu0 0
    %1714 = vmatprep.subr.bf16.mxu0 0
    %1715 = vmatpush1.bf16.msra.mxu0 0
    %1716 = vmatprep.subr.bf16.mxu0 0
    %1717 = vmatpush1.bf16.msra.mxu0 0
    %1718 = vmatprep.subr.bf16.mxu0 0
    %1719 = vmatpush1.bf16.msra.mxu0 0
    %1720 = vmatprep.subr.bf16.mxu0 0
    %1721 = vmatpush1.bf16.msra.mxu0 0
    %1722 = vmatprep.subr.bf16.mxu0 0
    %1723 = vmatpush1.bf16.msra.mxu0 0
    %1724 = vmatprep.subr.bf16.mxu0 0
    %1725 = vmatpush1.bf16.msra.mxu0 0
    %1726 = vmatprep.subr.bf16.mxu0 0
    %1727 = vmatpush1.bf16.msra.mxu0 0
    %1728 = vmatprep.subr.bf16.mxu0 0
    %1729 = vmatpush1.bf16.msra.mxu0 0
    %1730 = vmatprep.subr.bf16.mxu0 0
    %1731 = vmatpush1.bf16.msra.mxu0 0
    %1732 = vmatprep.subr.bf16.mxu0 0
    %1733 = vmatpush1.bf16.msra.mxu0 0
    %1734 = vmatprep.subr.bf16.mxu0 0
    %1735 = vmatpush1.bf16.msra.mxu0 0
    %1736 = vmatprep.subr.bf16.mxu0 0
    %1737 = vmatpush1.bf16.msra.mxu0 0
    %1738 = vmatprep.mubr.bf16.mxu0 0
    %1739 = vmatmul.mubr.bf16.gmra.mrb[0].mxu0 %v1704
    %v1740 = vpop.f32.mrb[0].mxu0
    %v1741 = vadd.f32 0.0, %v1740
    %v1742 = vpop.f32.mrb[0].mxu0
    %v1743 = vpop.f32.mrb[0].mxu0
    %v1744 = vadd.f32 0.0, %v1743
    %v1745 = vpop.f32.mrb[0].mxu0
    %1746 = vdwg.mxu0
    %v1747 = vadd.f32 %v1047, %v1741
    %v1748 = vadd.f32 %v1048, %v1744
    %v1749 = vld [vmem:[%s9 + $0xb] sm:$0x1]
    %v1750 = vlaneseq
    %v1751 = vshrl.u32 %v1750, 7
    %v1752 = vsub.s32 0, %v1751
    %v1753 = vrot.slane %v1749, %v1752
    %v1754 = vadd.f32 %v1747, %v1753
    %v1755 = vadd.f32 %v1748, %v1753
    %v1756 = vld [vmem:[%s9 + $0x9] sm:$0x1]
    %v1757 = vld [vmem:[%s9 + $0xa] sm:$0x1]
    %v1758 = vsel %vm113, %v1754, 0.0
    %1759 = vadd.xlane.f32.xlu0 %v1758
    %v1760 = vpop.xlane.xlu0 %1759
    %v1761 = vsel %vm113, %v1755, 0.0
    %1762 = vadd.xlane.f32.xlu0 %v1761
    %v1763 = vpop.xlane.xlu0 %1762
    %v1764 = vmul.f32 %v1760, %v120
    %v1765 = vmul.f32 %v1763, %v120
    %v1766 = vsub.f32 %v1754, %v1764
    %v1767 = vsub.f32 %v1755, %v1765
    %v1768 = vmul.f32 %v1766, %v1766
    %v1769 = vmul.f32 %v1767, %v1767
    %v1770 = vsel %vm113, %v1768, 0.0
    %1771 = vadd.xlane.f32.xlu0 %v1770
    %v1772 = vpop.xlane.xlu0 %1771
    %v1773 = vsel %vm113, %v1769, 0.0
    %1774 = vadd.xlane.f32.xlu0 %v1773
    %v1775 = vpop.xlane.xlu0 %1774
    %v1776 = vmul.f32 %v1772, %v120
    %v1777 = vmul.f32 %v1775, %v120
    %v1778 = vadd.f32 %v1776, 1e-05
    %v1779 = vadd.f32 %v1777, 1e-05
    %v1780 = vrsqrt.pop %v1778
    %v1781 = vrsqrt.pop %v1779
    %v1782 = vmul.f32 %v1766, %v1780
    %v1783 = vmul.f32 %v1767, %v1781
    %v1784 = vlaneseq
    %v1785 = vshrl.u32 %v1784, 7
    %v1786 = vsub.s32 0, %v1785
    %v1787 = vrot.slane %v1756, %v1786
    %v1788 = vmul.f32 %v1782, %v1787
    %v1789 = vmul.f32 %v1783, %v1787
    %v1790 = vlaneseq
    %v1791 = vshrl.u32 %v1790, 7
    %v1792 = vsub.s32 0, %v1791
    %v1793 = vrot.slane %v1757, %v1792
    %v1794 = vadd.f32 %v1788, %v1793
    %v1795 = vadd.f32 %v1789, %v1793
    %v1796 = vpack.c.bf16 %v1795, %v1794
    %s1797 = scalar_lea.vmem %s6, 16
    %v1798 = vld [vmem:[%s1797] sm:$0xf]
    %v1799 = vld [vmem:[%s1797 + $0x4] sm:$0xf]
    %v1800 = vld [vmem:[%s1797 + $0x8] sm:$0xf]
    %v1801 = vld [vmem:[%s1797 + $0xc] sm:$0xf]
    %v1802 = vld [vmem:[%s9 + $0xc] sm:$0x1]
    %v1803 = vlaneseq
    %v1804 = vshrl.u32 %v1803, 7
    %v1805 = vsub.s32 0, %v1804
    %v1806 = vrot.slane %v1802, %v1805
    %v1811 = vunpack.c.l.b16 %v1798
    %v1812 = vunpack.c.l.b16 %v1799
    %v1813 = vunpack.c.l.b16 %v1800
    %v1814 = vunpack.c.l.b16 %v1801
    %v1815 = vpack.c.b16 %v1812, %v1811
    %v1816 = vpack.c.b16 %v1814, %v1813
    %v1820 = vsel %vm113, %v1796, 0
    %1822 = vmatprep.subr.bf16.mxu0 0
    %1823 = vmatpush1.bf16.msra.mxu0 %v1815
    %1824 = vmatprep.subr.bf16.mxu0 0
    %1825 = vmatpush1.bf16.msra.mxu0 %v1816
    %1826 = vmatprep.subr.bf16.mxu0 0
    %1827 = vmatpush1.bf16.msra.mxu0 0
    %1828 = vmatprep.subr.bf16.mxu0 0
    %1829 = vmatpush1.bf16.msra.mxu0 0
    %1830 = vmatprep.subr.bf16.mxu0 0
    %1831 = vmatpush1.bf16.msra.mxu0 0
    %1832 = vmatprep.subr.bf16.mxu0 0
    %1833 = vmatpush1.bf16.msra.mxu0 0
    %1834 = vmatprep.subr.bf16.mxu0 0
    %1835 = vmatpush1.bf16.msra.mxu0 0
    %1836 = vmatprep.subr.bf16.mxu0 0
    %1837 = vmatpush1.bf16.msra.mxu0 0
    %1838 = vmatprep.subr.bf16.mxu0 0
    %1839 = vmatpush1.bf16.msra.mxu0 0
    %1840 = vmatprep.subr.bf16.mxu0 0
    %1841 = vmatpush1.bf16.msra.mxu0 0
    %1842 = vmatprep.subr.bf16.mxu0 0
    %1843 = vmatpush1.bf16.msra.mxu0 0
    %1844 = vmatprep.subr.bf16.mxu0 0
    %1845 = vmatpush1.bf16.msra.mxu0 0
    %1846 = vmatprep.subr.bf16.mxu0 0
    %1847 = vmatpush1.bf16.msra.mxu0 0
    %1848 = vmatprep.subr.bf16.mxu0 0
    %1849 = vmatpush1.bf16.msra.mxu0 0
    %1850 = vmatprep.subr.bf16.mxu0 0
    %1851 = vmatpush1.bf16.msra.mxu0 0
    %1852 = vmatprep.subr.bf16.mxu0 0
    %1853 = vmatpush1.bf16.msra.mxu0 0
    %1854 = vmatprep.mubr.bf16.mxu0 0
    %1855 = vmatmul.mubr.bf16.gmra.mrb[0].mxu0 %v1820
    %v1856 = vpop.f32.mrb[0].mxu0
    %v1857 = vadd.f32 %v1806, %v1856
    %v1858 = vpop.f32.mrb[0].mxu0
    %v1859 = vpop.f32.mrb[0].mxu0
    %v1860 = vadd.f32 %v1806, %v1859
    %v1861 = vpop.f32.mrb[0].mxu0
    %1862 = vdwg.mxu0
    %v1863 = vmul.f32 %v1857, 0.5
    %v1864 = vmul.f32 %v1860, 0.5
    %v1865 = vmul.f32 %v1857, 0.70710677
    %v1866 = vmul.f32 %v1860, 0.70710677
    %v1867 = verf.f32.pop %v1865
    %v1868 = verf.f32.pop %v1866
    %v1869 = vadd.f32 %v1867, 1.0
    %v1870 = vadd.f32 %v1868, 1.0
    %v1871 = vmul.f32 %v1863, %v1869
    %v1872 = vmul.f32 %v1864, %v1870
    %v1873 = vpack.c.bf16 %v1872, %v1871
    %s1874 = scalar_lea.vmem %s7, 64
    %v1875 = vld [vmem:[%s1874] sm:$0xf]
    %v1876 = vld [vmem:[%s1874 + $0x4] sm:$0xf]
    %v1877 = vld [vmem:[%s1874 + $0x8] sm:$0xf]
    %v1878 = vld [vmem:[%s1874 + $0xc] sm:$0xf]
    %v1879 = vld [vmem:[%s1874 + $0x10] sm:$0xf]
    %v1880 = vld [vmem:[%s1874 + $0x14] sm:$0xf]
    %v1881 = vld [vmem:[%s1874 + $0x18] sm:$0xf]
    %v1882 = vld [vmem:[%s1874 + $0x1c] sm:$0xf]
    %v1883 = vld [vmem:[%s1874 + $0x20] sm:$0xf]
    %v1884 = vld [vmem:[%s1874 + $0x24] sm:$0xf]
    %v1885 = vld [vmem:[%s1874 + $0x28] sm:$0xf]
    %v1886 = vld [vmem:[%s1874 + $0x2c] sm:$0xf]
    %v1887 = vld [vmem:[%s1874 + $0x30] sm:$0xf]
    %v1888 = vld [vmem:[%s1874 + $0x34] sm:$0xf]
    %v1889 = vld [vmem:[%s1874 + $0x38] sm:$0xf]
    %v1890 = vld [vmem:[%s1874 + $0x3c] sm:$0xf]
    %v1891 = vld [vmem:[%s9 + $0xd] sm:$0x1]
    %v1892 = vlaneseq
    %v1893 = vshrl.u32 %v1892, 7
    %v1894 = vsub.s32 0, %v1893
    %v1895 = vrot.slane %v1891, %v1894
    %v1912 = vunpack.c.l.b16 %v1875
    %v1913 = vunpack.c.l.b16 %v1876
    %v1914 = vunpack.c.l.b16 %v1877
    %v1915 = vunpack.c.l.b16 %v1878
    %v1916 = vunpack.c.l.b16 %v1879
    %v1917 = vunpack.c.l.b16 %v1880
    %v1918 = vunpack.c.l.b16 %v1881
    %v1919 = vunpack.c.l.b16 %v1882
    %v1920 = vunpack.c.l.b16 %v1883
    %v1921 = vunpack.c.l.b16 %v1884
    %v1922 = vunpack.c.l.b16 %v1885
    %v1923 = vunpack.c.l.b16 %v1886
    %v1924 = vunpack.c.l.b16 %v1887
    %v1925 = vunpack.c.l.b16 %v1888
    %v1926 = vunpack.c.l.b16 %v1889
    %v1927 = vunpack.c.l.b16 %v1890
    %v1928 = vpack.c.b16 %v1913, %v1912
    %v1929 = vpack.c.b16 %v1915, %v1914
    %v1930 = vpack.c.b16 %v1917, %v1916
    %v1931 = vpack.c.b16 %v1919, %v1918
    %v1932 = vpack.c.b16 %v1921, %v1920
    %v1933 = vpack.c.b16 %v1923, %v1922
    %v1934 = vpack.c.b16 %v1925, %v1924
    %v1935 = vpack.c.b16 %v1927, %v1926
    %1944 = vmatprep.subr.bf16.mxu0 0
    %1945 = vmatpush1.bf16.msra.mxu0 %v1928
    %1946 = vmatprep.subr.bf16.mxu0 0
    %1947 = vmatpush1.bf16.msra.mxu0 %v1929
    %1948 = vmatprep.subr.bf16.mxu0 0
    %1949 = vmatpush1.bf16.msra.mxu0 %v1930
    %1950 = vmatprep.subr.bf16.mxu0 0
    %1951 = vmatpush1.bf16.msra.mxu0 %v1931
    %1952 = vmatprep.subr.bf16.mxu0 0
    %1953 = vmatpush1.bf16.msra.mxu0 %v1932
    %1954 = vmatprep.subr.bf16.mxu0 0
    %1955 = vmatpush1.bf16.msra.mxu0 %v1933
    %1956 = vmatprep.subr.bf16.mxu0 0
    %1957 = vmatpush1.bf16.msra.mxu0 %v1934
    %1958 = vmatprep.subr.bf16.mxu0 0
    %1959 = vmatpush1.bf16.msra.mxu0 %v1935
    %1960 = vmatprep.subr.bf16.mxu0 0
    %1961 = vmatpush1.bf16.msra.mxu0 0
    %1962 = vmatprep.subr.bf16.mxu0 0
    %1963 = vmatpush1.bf16.msra.mxu0 0
    %1964 = vmatprep.subr.bf16.mxu0 0
    %1965 = vmatpush1.bf16.msra.mxu0 0
    %1966 = vmatprep.subr.bf16.mxu0 0
    %1967 = vmatpush1.bf16.msra.mxu0 0
    %1968 = vmatprep.subr.bf16.mxu0 0
    %1969 = vmatpush1.bf16.msra.mxu0 0
    %1970 = vmatprep.subr.bf16.mxu0 0
    %1971 = vmatpush1.bf16.msra.mxu0 0
    %1972 = vmatprep.subr.bf16.mxu0 0
    %1973 = vmatpush1.bf16.msra.mxu0 0
    %1974 = vmatprep.subr.bf16.mxu0 0
    %1975 = vmatpush1.bf16.msra.mxu0 0
    %1976 = vmatprep.mubr.bf16.mxu0 0
    %1977 = vmatmul.mubr.bf16.gmra.mrb[0].mxu0 %v1873
    %v1978 = vpop.f32.mrb[0].mxu0
    %v1979 = vadd.f32 %v1895, %v1978
    %v1980 = vpop.f32.mrb[0].mxu0
    %v1981 = vpop.f32.mrb[0].mxu0
    %v1982 = vadd.f32 %v1895, %v1981
    %v1983 = vpop.f32.mrb[0].mxu0
    %1984 = vdwg.mxu0
    %v1985 = vadd.f32 %v1754, %v1979
    %v1986 = vadd.f32 %v1755, %v1982
    %v1987 = vld [vmem:[%s9 + $0xe] sm:$0x1]
    %v1988 = vld [vmem:[%s9 + $0xf] sm:$0x1]
    %v1989 = vsel %vm113, %v1985, 0.0
    %1990 = vadd.xlane.f32.xlu0 %v1989
    %v1991 = vpop.xlane.xlu0 %1990
    %v1992 = vsel %vm113, %v1986, 0.0
    %1993 = vadd.xlane.f32.xlu0 %v1992
    %v1994 = vpop.xlane.xlu0 %1993
    %v1995 = vmul.f32 %v1991, %v120
    %v1996 = vmul.f32 %v1994, %v120
    %v1997 = vsub.f32 %v1985, %v1995
    %v1998 = vsub.f32 %v1986, %v1996
    %v1999 = vmul.f32 %v1997, %v1997
    %v2000 = vmul.f32 %v1998, %v1998
    %v2001 = vsel %vm113, %v1999, 0.0
    %2002 = vadd.xlane.f32.xlu0 %v2001
    %v2003 = vpop.xlane.xlu0 %2002
    %v2004 = vsel %vm113, %v2000, 0.0
    %2005 = vadd.xlane.f32.xlu0 %v2004
    %v2006 = vpop.xlane.xlu0 %2005
    %v2007 = vmul.f32 %v2003, %v120
    %v2008 = vmul.f32 %v2006, %v120
    %v2009 = vadd.f32 %v2007, 1e-05
    %v2010 = vadd.f32 %v2008, 1e-05
    %v2011 = vrsqrt.pop %v2009
    %v2012 = vrsqrt.pop %v2010
    %v2013 = vmul.f32 %v1997, %v2011
    %v2014 = vmul.f32 %v1998, %v2012
    %v2015 = vlaneseq
    %v2016 = vshrl.u32 %v2015, 7
    %v2017 = vsub.s32 0, %v2016
    %v2018 = vrot.slane %v1987, %v2017
    %v2019 = vmul.f32 %v2013, %v2018
    %v2020 = vmul.f32 %v2014, %v2018
    %v2021 = vlaneseq
    %v2022 = vshrl.u32 %v2021, 7
    %v2023 = vsub.s32 0, %v2022
    %v2024 = vrot.slane %v1988, %v2023
    %v2025 = vadd.f32 %v2019, %v2024
    %v2026 = vadd.f32 %v2020, %v2024
    %v2027 = vpack.c.bf16 %v2026, %v2025
    %v2028 = vld [vmem:[%s8] sm:$0xf]
    %v2029 = vld [vmem:[%s8 + $0x4] sm:$0xf]
    %v2030 = vld [vmem:[%s8 + $0x8] sm:$0xf]
    %v2031 = vld [vmem:[%s8 + $0xc] sm:$0xf]
    %v2032 = vld [vmem:[%s9 + $0x10] sm:$0x1]
    %v2033 = vlaneseq
    %v2034 = vshrl.u32 %v2033, 7
    %v2035 = vsub.s32 0, %v2034
    %v2036 = vrot.slane %v2032, %v2035
    %v2041 = vunpack.c.l.b16 %v2028
    %v2042 = vunpack.c.l.b16 %v2029
    %v2043 = vunpack.c.l.b16 %v2030
    %v2044 = vunpack.c.l.b16 %v2031
    %v2045 = vpack.c.b16 %v2042, %v2041
    %v2046 = vpack.c.b16 %v2044, %v2043
    %v2050 = vsel %vm113, %v2027, 0
    %2052 = vmatprep.subr.bf16.mxu0 0
    %2053 = vmatpush1.bf16.msra.mxu0 %v2045
    %2054 = vmatprep.subr.bf16.mxu0 0
    %2055 = vmatpush1.bf16.msra.mxu0 %v2046
    %2056 = vmatprep.subr.bf16.mxu0 0
    %2057 = vmatpush1.bf16.msra.mxu0 0
    %2058 = vmatprep.subr.bf16.mxu0 0
    %2059 = vmatpush1.bf16.msra.mxu0 0
    %2060 = vmatprep.subr.bf16.mxu0 0
    %2061 = vmatpush1.bf16.msra.mxu0 0
    %2062 = vmatprep.subr.bf16.mxu0 0
    %2063 = vmatpush1.bf16.msra.mxu0 0
    %2064 = vmatprep.subr.bf16.mxu0 0
    %2065 = vmatpush1.bf16.msra.mxu0 0
    %2066 = vmatprep.subr.bf16.mxu0 0
    %2067 = vmatpush1.bf16.msra.mxu0 0
    %2068 = vmatprep.subr.bf16.mxu0 0
    %2069 = vmatpush1.bf16.msra.mxu0 0
    %2070 = vmatprep.subr.bf16.mxu0 0
    %2071 = vmatpush1.bf16.msra.mxu0 0
    %2072 = vmatprep.subr.bf16.mxu0 0
    %2073 = vmatpush1.bf16.msra.mxu0 0
    %2074 = vmatprep.subr.bf16.mxu0 0
    %2075 = vmatpush1.bf16.msra.mxu0 0
    %2076 = vmatprep.subr.bf16.mxu0 0
    %2077 = vmatpush1.bf16.msra.mxu0 0
    %2078 = vmatprep.subr.bf16.mxu0 0
    %2079 = vmatpush1.bf16.msra.mxu0 0
    %2080 = vmatprep.subr.bf16.mxu0 0
    %2081 = vmatpush1.bf16.msra.mxu0 0
    %2082 = vmatprep.subr.bf16.mxu0 0
    %2083 = vmatpush1.bf16.msra.mxu0 0
    %2084 = vmatprep.mubr.bf16.mxu0 0
    %2085 = vmatmul.mubr.bf16.gmra.mrb[0].mxu0 %v2050
    %v2086 = vpop.f32.mrb[0].mxu0
    %v2087 = vadd.f32 %v2036, %v2086
    %v2088 = vpop.f32.mrb[0].mxu0
    %v2089 = vpop.f32.mrb[0].mxu0
    %v2090 = vadd.f32 %v2036, %v2089
    %v2091 = vpop.f32.mrb[0].mxu0
    %2092 = vdwg.mxu0
    %2093 = vst [vmem:[#allocation2] sm:$0xff] %v2087
    %2094 = vst [vmem:[#allocation2 + $0x8] sm:$0xff] %v2090
    // Predicated region
    $region42: #{gpt_forward.1} parent=1 // pred_check
      _
    $region43: #{gpt_forward.1} parent=1 // pred_check_branch
      %2096 = sbr.rel (0) target = $region45
    $region44: #{gpt_forward.1} parent=1 // pred_region
      %s2098 = ssub.s32 256, 256
      %2099 = vsyncadd [#allocation3], %s2098
      %s2100 = sshll.u32 [#allocation2], 4
      %s2101 = int_to_ptr.vmem [resolvable:$true] %s2100
      %2106 = dma.vmem_to_hbm [thread:$0]  %s2101, 256, %s10, [#allocation3], 128, 128, 8
    $region45: #{gpt_forward.1} parent=1 // pred_fallthru
      _
    // Predicated region
    $region46: #{gpt_forward.1} parent=1 // pred_check
      _
    $region47: #{gpt_forward.1} parent=1 // pred_check_branch
      %2108 = sbr.rel (0) target = $region49
    $region48: #{gpt_forward.1} parent=1 // pred_region
      %2109 = dma.done [#allocation3], 256
    $region49: #{gpt_forward.1} parent=1 // pred_fallthru
      _
    %2110 = vsyncpa [#allocation3], 1

</llo_original>
